<compile_context>
chip_gen: v5e
topology: v5e:2x2
jax: 0.10.0
libtpu: 0.0.40
codegen_flags: <defaults>
</compile_context>

<pallas_src>
import functools
import math

import jax
import jax.numpy as jnp
from jax import lax
from jax.experimental import pallas as pl
from jax.experimental.pallas import tpu as pltpu


def _mha_kernel(xkv_ref, xq_ref, wq_ref, wk_ref, wv_ref, wo_ref, bo_ref, o_ref,
                *, num_heads, d_head, q_tile, seq_len, compute_dtype,
                approx_softmax):
    """One (batch, query-tile) grid cell.

    xkv_ref: (1, T_pad, d_in)   full (padded) sequence, used for K/V projections
    xq_ref : (1, q_tile, d_in)  this query tile
    w*_ref : pre-transposed weights (fan_in, fan_out), bo_ref: (1, d_out)
    o_ref  : (1, q_tile, d_out)
    """
    cdt = compute_dtype
    d_out = num_heads * d_head
    qi = pl.program_id(1)
    q_start = qi * q_tile                        # global row offset of this Q tile

    x_kv = xkv_ref[0].astype(cdt)                # (T_pad, d_in)
    x_q = xq_ref[0].astype(cdt)                  # (q_tile, d_in)
    t_kv = x_kv.shape[0]

    # --- QKV projections (qkv_bias=False); f32 accumulation on the MXU. ---
    k = jnp.dot(x_kv, wk_ref[...].astype(cdt), preferred_element_type=jnp.float32)
    v = jnp.dot(x_kv, wv_ref[...].astype(cdt), preferred_element_type=jnp.float32)
    q = jnp.dot(x_q, wq_ref[...].astype(cdt), preferred_element_type=jnp.float32)

    # Fold 1/sqrt(d_head) into Q: O(T*d_out) multiplies instead of O(H*T^2).
    q = q * jnp.float32(1.0 / math.sqrt(d_head))

    # --- head-batched layout (H, rows, d_head); no per-head Python loop. ---
    q3 = q.reshape(q_tile, num_heads, d_head).transpose(1, 0, 2)   # (H, tq, dh)
    k3 = k.reshape(t_kv, num_heads, d_head).transpose(1, 0, 2)     # (H, T,  dh)
    v3 = v.reshape(t_kv, num_heads, d_head).transpose(1, 0, 2)     # (H, T,  dh)

    # Scores for all heads in one batched dot_general (contracts on the last
    # dim of both operands -> no explicit transpose of K).
    s = jnp.einsum("hqd,hkd->hqk", q3.astype(cdt), k3.astype(cdt),
                   preferred_element_type=jnp.float32)             # (H, tq, T)

    # Causal + padding mask generated in-kernel. A large finite negative bias
    # (added) instead of where(mask, -inf) avoids the all-masked-row NaN hazard
    # and still underflows to exactly 0 after softmax.
    row = lax.broadcasted_iota(jnp.int32, (q_tile, t_kv), 0) + q_start
    col = lax.broadcasted_iota(jnp.int32, (q_tile, t_kv), 1)
    bias = jnp.where((col > row) | (col >= seq_len),
                     jnp.float32(-1e30), jnp.float32(0.0))
    s = s + bias[None, :, :]

    # --- softmax over keys (f32 throughout; EUP reciprocal on fast path) ---
    m = jnp.max(s, axis=-1, keepdims=True)
    p = jnp.exp(s - m)
    l = jnp.sum(p, axis=-1, keepdims=True)
    p = p * pl.reciprocal(l, approx=approx_softmax)
    # dropout(p=0.0) == identity -> omitted.

    # Context for all heads at once, then concat heads back onto the lane axis.
    ctx = jnp.einsum("hqk,hkd->hqd", p.astype(cdt), v3.astype(cdt),
                     preferred_element_type=jnp.float32)           # (H, tq, dh)
    ctx = ctx.transpose(1, 0, 2).reshape(q_tile, d_out)            # (tq, d_out)

    out = jnp.dot(ctx.astype(cdt), wo_ref[...].astype(cdt),
                  preferred_element_type=jnp.float32) + bo_ref[...]
    o_ref[0] = out.astype(o_ref.dtype)


def _pick_q_tile(t_pad):
    # Largest convenient tile (<=256, feeds v6e/v7x 256x256 MXU) dividing t_pad.
    for cand in (256, 128, 64, 32, 16, 8):
        if t_pad % cand == 0:
            return cand
    return t_pad


def mha_forward(x, wq, wk, wv, wo, bo, *, num_heads,
                compute_dtype=jnp.float32, approx_softmax=False):
    """x: (B, T, d_in); w*: pre-transposed (fan_in, fan_out); bo: (1, d_out)."""
    B, T, d_in = x.shape
    d_out = wq.shape[1]
    assert d_out % num_heads == 0
    d_head = d_out // num_heads

    # Pad the sequence to a sublane multiple; padded keys are masked in-kernel
    # and padded query rows are sliced off below.
    t_pad = -(-T // 8) * 8
    if t_pad != T:
        x = jnp.pad(x, ((0, 0), (0, t_pad - T), (0, 0)))
    q_tile = _pick_q_tile(t_pad)
    n_q = t_pad // q_tile

    kernel = functools.partial(
        _mha_kernel, num_heads=num_heads, d_head=d_head, q_tile=q_tile,
        seq_len=T, compute_dtype=compute_dtype, approx_softmax=approx_softmax)

    def build(single_buffer_weights):
        def const_spec(shape):
            idx = lambda b, i, _s=shape: (0,) * len(_s)
            if single_buffer_weights:
                # Index map never changes -> single-buffer to avoid a dead 2x
                # VMEM copy of the weights (matters at large d on v7x).
                return pl.BlockSpec(shape, idx, pipeline_mode=pl.Buffered(1))
            return pl.BlockSpec(shape, idx)

        grid_spec = pltpu.PrefetchScalarGridSpec(
            num_scalar_prefetch=0,
            grid=(B, n_q),
            in_specs=[
                pl.BlockSpec((1, t_pad, d_in), lambda b, i: (b, 0, 0)),   # x (K/V)
                pl.BlockSpec((1, q_tile, d_in), lambda b, i: (b, i, 0)),  # x (Q tile)
                const_spec((d_in, d_out)),    # W_query^T
                const_spec((d_in, d_out)),    # W_key^T
                const_spec((d_in, d_out)),    # W_value^T
                const_spec((d_out, d_out)),   # out_proj^T
                const_spec((1, d_out)),       # out_proj bias
            ],
            out_specs=pl.BlockSpec((1, q_tile, d_out), lambda b, i: (b, i, 0)),
        )
        return pl.pallas_call(
            kernel,
            out_shape=jax.ShapeDtypeStruct((B, t_pad, d_out), x.dtype),
            grid_spec=grid_spec,
            compiler_params=pltpu.CompilerParams(
                # Two parallel axes: batch and query tiles, so v7x's 2
                # TensorCores have work even at B=1.
                dimension_semantics=("parallel", "parallel")),
        )

    try:
        out = build(True)(x, x, wq, wk, wv, wo, bo)
    except Exception:
        # Fallback if pl.Buffered(1) single-buffering is rejected by this jax.
        out = build(False)(x, x, wq, wk, wv, wo, bo)

    return out[:, :T, :]


def mha_reference(x, wq, wk, wv, wo, bo, mask, *, num_heads):
    """Pure-JAX reference reproducing the PyTorch forward (use_cache=False)."""
    B, T, d_in = x.shape
    d_out = wq.shape[1]
    d_head = d_out // num_heads

    q = (x @ wq).reshape(B, T, num_heads, d_head).transpose(0, 2, 1, 3)
    k = (x @ wk).reshape(B, T, num_heads, d_head).transpose(0, 2, 1, 3)
    v = (x @ wv).reshape(B, T, num_heads, d_head).transpose(0, 2, 1, 3)

    scores = jnp.einsum("bhqd,bhkd->bhqk", q, k)
    scores = jnp.where(mask[None, None] > 0.5, -jnp.inf, scores)
    weights = jax.nn.softmax(scores / (d_head ** 0.5), axis=-1)
    ctx = jnp.einsum("bhqk,bhkd->bhqd", weights, v)
    ctx = ctx.transpose(0, 2, 1, 3).reshape(B, T, d_out)
    return ctx @ wo + bo


if __name__ == "__main__":
    # Small shapes consistent with the module.
    B, T = 2, 8
    d_in, d_out = 32, 32
    num_heads = 4
    context_length = T

    key = jax.random.PRNGKey(0)
    kx, kq, kk, kv, ko, kb = jax.random.split(key, 6)

    x = jax.random.normal(kx, (B, T, d_in), dtype=jnp.float32)

    # Deterministic nn.Linear-like init, stored pre-transposed (fan_in, fan_out).
    def init_w(k, fan_in, fan_out):
        bound = 1.0 / (fan_in ** 0.5)
        return jax.random.uniform(k, (fan_in, fan_out), jnp.float32, -bound, bound)

    wq = init_w(kq, d_in, d_out)
    wk = init_w(kk, d_in, d_out)
    wv = init_w(kv, d_in, d_out)
    wo = init_w(ko, d_out, d_out)
    bo = jax.random.uniform(kb, (1, d_out), jnp.float32,
                            -1.0 / (d_out ** 0.5), 1.0 / (d_out ** 0.5))

    # Causal mask buffer (reference only; the kernel builds its mask via iota).
    mask = jnp.triu(jnp.ones((context_length, context_length), jnp.float32), k=1)[:T, :T]
    ref = mha_reference(x, wq, wk, wv, wo, bo, mask, num_heads=num_heads)

    # Precise path (f32 MXU operands, exact softmax divide) -> tight check.
    out = mha_forward(x, wq, wk, wv, wo, bo, num_heads=num_heads,
                      compute_dtype=jnp.float32, approx_softmax=False)
    out = jax.block_until_ready(out)
    assert out.shape == (B, T, d_out)
    assert jnp.allclose(out, ref, atol=1e-5, rtol=1e-5), "f32 mismatch vs reference"

    # Fast path (bf16 MXU operands + f32 acc, EUP reciprocal) -> loose check.
    out_fast = mha_forward(x, wq, wk, wv, wo, bo, num_heads=num_heads,
                           compute_dtype=jnp.bfloat16, approx_softmax=True)
    out_fast = jax.block_until_ready(out_fast)
    assert jnp.allclose(out_fast, ref, atol=1e-1, rtol=1e-1), "bf16 mismatch vs reference"

    print("KERNEL_OK")
</pallas_src>

<mosaic_0001>
module attributes {stable_mosaic.version = 11 : i64} {
  func.func @_mha_kernel(%arg0: i32, %arg1: i32, %arg2: memref<1x8x32xf32, #tpu.memory_space<vmem>>, %arg3: memref<1x8x32xf32, #tpu.memory_space<vmem>>, %arg4: memref<32x32xf32, #tpu.memory_space<vmem>>, %arg5: memref<32x32xf32, #tpu.memory_space<vmem>>, %arg6: memref<32x32xf32, #tpu.memory_space<vmem>>, %arg7: memref<32x32xf32, #tpu.memory_space<vmem>>, %arg8: memref<1x32xf32, #tpu.memory_space<vmem>>, %arg9: memref<1x8x32xf32, #tpu.memory_space<vmem>>) attributes {dimension_semantics = [#tpu.dimension_semantics<parallel>, #tpu.dimension_semantics<parallel>], iteration_bounds = array<i64: 2, 1>, scalar_prefetch = 0 : i64, scratch_operands = 0 : i64, tpu.core_type = #tpu.core_type<tc>, window_params = [{transform_indices = @transform_0, window_bounds = array<i64: 1, 8, 32>}, {transform_indices = @transform_1, window_bounds = array<i64: 1, 8, 32>}, {pipeline_mode = #tpu.pipeline_mode<synchronous>, transform_indices = @transform_2, window_bounds = array<i64: 32, 32>}, {pipeline_mode = #tpu.pipeline_mode<synchronous>, transform_indices = @transform_3, window_bounds = array<i64: 32, 32>}, {pipeline_mode = #tpu.pipeline_mode<synchronous>, transform_indices = @transform_4, window_bounds = array<i64: 32, 32>}, {pipeline_mode = #tpu.pipeline_mode<synchronous>, transform_indices = @transform_5, window_bounds = array<i64: 32, 32>}, {pipeline_mode = #tpu.pipeline_mode<synchronous>, transform_indices = @transform_6, window_bounds = array<i64: 1, 32>}, {transform_indices = @transform_7, window_bounds = array<i64: 1, 8, 32>}]} {
    %c8_i32 = arith.constant 8 : i32
    %0 = arith.muli %arg1, %c8_i32 : i32
    %c0 = arith.constant 0 : index
    %c0_0 = arith.constant 0 : index
    %c0_1 = arith.constant 0 : index
    %1 = vector.load %arg2[%c0, %c0_0, %c0_1] : memref<1x8x32xf32, #tpu.memory_space<vmem>>, vector<1x8x32xf32>
    %2 = vector.shape_cast %1 : vector<1x8x32xf32> to vector<8x32xf32>
    %c0_2 = arith.constant 0 : index
    %c0_3 = arith.constant 0 : index
    %c0_4 = arith.constant 0 : index
    %3 = vector.load %arg3[%c0_2, %c0_3, %c0_4] : memref<1x8x32xf32, #tpu.memory_space<vmem>>, vector<1x8x32xf32>
    %4 = vector.shape_cast %3 : vector<1x8x32xf32> to vector<8x32xf32>
    %c0_5 = arith.constant 0 : index
    %c0_6 = arith.constant 0 : index
    %5 = vector.load %arg5[%c0_5, %c0_6] : memref<32x32xf32, #tpu.memory_space<vmem>>, vector<32x32xf32>
    %cst = arith.constant dense<0.000000e+00> : vector<8x32xf32>
    %6 = tpu.matmul %2, %5, %cst {dimension_numbers = #tpu.dot_dimension_numbers<[1], [0], [0], [1], [0, 0, 1, 1], [], []>} : vector<8x32xf32>, vector<32x32xf32>, vector<8x32xf32> -> vector<8x32xf32>
    %c0_7 = arith.constant 0 : index
    %c0_8 = arith.constant 0 : index
    %7 = vector.load %arg6[%c0_7, %c0_8] : memref<32x32xf32, #tpu.memory_space<vmem>>, vector<32x32xf32>
    %cst_9 = arith.constant dense<0.000000e+00> : vector<8x32xf32>
    %8 = tpu.matmul %2, %7, %cst_9 {dimension_numbers = #tpu.dot_dimension_numbers<[1], [0], [0], [1], [0, 0, 1, 1], [], []>} : vector<8x32xf32>, vector<32x32xf32>, vector<8x32xf32> -> vector<8x32xf32>
    %c0_10 = arith.constant 0 : index
    %c0_11 = arith.constant 0 : index
    %9 = vector.load %arg4[%c0_10, %c0_11] : memref<32x32xf32, #tpu.memory_space<vmem>>, vector<32x32xf32>
    %cst_12 = arith.constant dense<0.000000e+00> : vector<8x32xf32>
    %10 = tpu.matmul %4, %9, %cst_12 {dimension_numbers = #tpu.dot_dimension_numbers<[1], [0], [0], [1], [0, 0, 1, 1], [], []>} : vector<8x32xf32>, vector<32x32xf32>, vector<8x32xf32> -> vector<8x32xf32>
    %cst_13 = arith.constant 0.353553385 : f32
    %11 = vector.broadcast %cst_13 : f32 to vector<8x32xf32>
    %12 = arith.mulf %10, %11 : vector<8x32xf32>
    %13 = vector.shape_cast %12 : vector<8x32xf32> to vector<8x4x8xf32>
    %14 = tpu.transpose %13, [1, 0, 2] : vector<8x4x8xf32> -> vector<4x8x8xf32>
    %15 = vector.shape_cast %6 : vector<8x32xf32> to vector<8x4x8xf32>
    %16 = tpu.transpose %15, [1, 0, 2] : vector<8x4x8xf32> -> vector<4x8x8xf32>
    %17 = vector.shape_cast %8 : vector<8x32xf32> to vector<8x4x8xf32>
    %18 = tpu.transpose %17, [1, 0, 2] : vector<8x4x8xf32> -> vector<4x8x8xf32>
    "tpu.trace_start"() <{level = 10 : i32, message = "hqd,hkd->hqk"}> : () -> ()
    %cst_14 = arith.constant dense<0.000000e+00> : vector<4x8x8xf32>
    %19 = tpu.matmul %14, %16, %cst_14 {dimension_numbers = #tpu.dot_dimension_numbers<[2], [2], [1], [1], [0, 0, 0, 1, 1, 1], [0], [0]>} : vector<4x8x8xf32>, vector<4x8x8xf32>, vector<4x8x8xf32> -> vector<4x8x8xf32>
    "tpu.trace_stop"() : () -> ()
    %20 = tpu.iota {dimensions = array<i32: 0>} : vector<8x8xi32>
    %21 = vector.broadcast %0 : i32 to vector<8x8xi32>
    %22 = arith.addi %20, %21 : vector<8x8xi32>
    %23 = tpu.iota {dimensions = array<i32: 1>} : vector<8x8xi32>
    %24 = arith.cmpi sgt, %23, %22 : vector<8x8xi32>
    %c8_i32_15 = arith.constant 8 : i32
    %25 = vector.broadcast %c8_i32_15 : i32 to vector<8x8xi32>
    %26 = arith.cmpi sge, %23, %25 : vector<8x8xi32>
    %27 = arith.ori %24, %26 : vector<8x8xi1>
    %cst_16 = arith.constant -1.000000e+30 : f32
    %cst_17 = arith.constant 0.000000e+00 : f32
    %28 = vector.broadcast %cst_16 : f32 to vector<8x8xf32>
    %29 = vector.broadcast %cst_17 : f32 to vector<8x8xf32>
    %30 = arith.select %27, %28, %29 : vector<8x8xi1>, vector<8x8xf32>
    %31 = vector.shape_cast %30 : vector<8x8xf32> to vector<1x8x8xf32>
    %32 = vector.broadcast %31 : vector<1x8x8xf32> to vector<4x8x8xf32>
    %33 = arith.addf %19, %32 : vector<4x8x8xf32>
    %cst_18 = arith.constant dense<0xFF800000> : vector<4x8xf32>
    %34 = vector.multi_reduction <maximumf>, %33, %cst_18 [2] : vector<4x8x8xf32> to vector<4x8xf32>
    %35 = vector.shape_cast %34 : vector<4x8xf32> to vector<4x8x1xf32>
    %36 = vector.broadcast %35 : vector<4x8x1xf32> to vector<4x8x8xf32>
    %37 = arith.subf %33, %36 : vector<4x8x8xf32>
    %38 = math.exp %37 : vector<4x8x8xf32>
    %cst_19 = arith.constant dense<0.000000e+00> : vector<4x8xf32>
    %39 = vector.multi_reduction <add>, %38, %cst_19 [2] : vector<4x8x8xf32> to vector<4x8xf32>
    %40 = vector.shape_cast %39 : vector<4x8xf32> to vector<4x8x1xf32>
    %41 = tpu.reciprocal %40 : vector<4x8x1xf32> -> vector<4x8x1xf32>
    %42 = vector.broadcast %41 : vector<4x8x1xf32> to vector<4x8x8xf32>
    %43 = arith.mulf %38, %42 : vector<4x8x8xf32>
    "tpu.trace_start"() <{level = 10 : i32, message = "hqk,hkd->hqd"}> : () -> ()
    %cst_20 = arith.constant dense<0.000000e+00> : vector<4x8x8xf32>
    %44 = tpu.matmul %43, %18, %cst_20 {dimension_numbers = #tpu.dot_dimension_numbers<[2], [1], [1], [2], [0, 0, 0, 1, 1, 2], [0], [0]>} : vector<4x8x8xf32>, vector<4x8x8xf32>, vector<4x8x8xf32> -> vector<4x8x8xf32>
    "tpu.trace_stop"() : () -> ()
    %45 = tpu.transpose %44, [1, 0, 2] : vector<4x8x8xf32> -> vector<8x4x8xf32>
    %46 = vector.shape_cast %45 : vector<8x4x8xf32> to vector<8x32xf32>
    %c0_21 = arith.constant 0 : index
    %c0_22 = arith.constant 0 : index
    %47 = vector.load %arg7[%c0_21, %c0_22] : memref<32x32xf32, #tpu.memory_space<vmem>>, vector<32x32xf32>
    %cst_23 = arith.constant dense<0.000000e+00> : vector<8x32xf32>
    %48 = tpu.matmul %46, %47, %cst_23 {dimension_numbers = #tpu.dot_dimension_numbers<[1], [0], [0], [1], [0, 0, 1, 1], [], []>} : vector<8x32xf32>, vector<32x32xf32>, vector<8x32xf32> -> vector<8x32xf32>
    %c0_24 = arith.constant 0 : index
    %c0_25 = arith.constant 0 : index
    %49 = vector.load %arg8[%c0_24, %c0_25] : memref<1x32xf32, #tpu.memory_space<vmem>>, vector<1x32xf32>
    %50 = vector.broadcast %49 : vector<1x32xf32> to vector<8x32xf32>
    %51 = arith.addf %48, %50 : vector<8x32xf32>
    %c0_26 = arith.constant 0 : index
    %c0_27 = arith.constant 0 : index
    %c0_28 = arith.constant 0 : index
    %52 = vector.load %arg9[%c0_26, %c0_27, %c0_28] : memref<1x8x32xf32, #tpu.memory_space<vmem>>, vector<1x8x32xf32>
    %53 = vector.shape_cast %52 : vector<1x8x32xf32> to vector<8x32xf32>
    %54 = vector.shape_cast %51 : vector<8x32xf32> to vector<1x8x32xf32>
    tpu.vector_store %arg9[%c0_26, %c0_27, %c0_28], %54 {strides = array<i32>} : memref<1x8x32xf32, #tpu.memory_space<vmem>>, vector<1x8x32xf32>,
    return
  }
  func.func @transform_0(%arg0: i32, %arg1: i32) -> (i32, i32, i32) {
    %c0_i32 = arith.constant 0 : i32
    %c0_i32_0 = arith.constant 0 : i32
    %c0_i32_1 = arith.constant 0 : i32
    return %arg0, %c0_i32, %c0_i32_0 : i32, i32, i32
  }
  func.func @transform_1(%arg0: i32, %arg1: i32) -> (i32, i32, i32) {
    %c0_i32 = arith.constant 0 : i32
    %c0_i32_0 = arith.constant 0 : i32
    return %arg0, %arg1, %c0_i32 : i32, i32, i32
  }
  func.func @transform_2(%arg0: i32, %arg1: i32) -> (i32, i32) {
    %c0_i32 = arith.constant 0 : i32
    %c0_i32_0 = arith.constant 0 : i32
    %c0_i32_1 = arith.constant 0 : i32
    return %c0_i32, %c0_i32_0 : i32, i32
  }
  func.func @transform_3(%arg0: i32, %arg1: i32) -> (i32, i32) {
    %c0_i32 = arith.constant 0 : i32
    %c0_i32_0 = arith.constant 0 : i32
    %c0_i32_1 = arith.constant 0 : i32
    return %c0_i32, %c0_i32_0 : i32, i32
  }
  func.func @transform_4(%arg0: i32, %arg1: i32) -> (i32, i32) {
    %c0_i32 = arith.constant 0 : i32
    %c0_i32_0 = arith.constant 0 : i32
    %c0_i32_1 = arith.constant 0 : i32
    return %c0_i32, %c0_i32_0 : i32, i32
  }
  func.func @transform_5(%arg0: i32, %arg1: i32) -> (i32, i32) {
    %c0_i32 = arith.constant 0 : i32
    %c0_i32_0 = arith.constant 0 : i32
    %c0_i32_1 = arith.constant 0 : i32
    return %c0_i32, %c0_i32_0 : i32, i32
  }
  func.func @transform_6(%arg0: i32, %arg1: i32) -> (i32, i32) {
    %c0_i32 = arith.constant 0 : i32
    %c0_i32_0 = arith.constant 0 : i32
    %c0_i32_1 = arith.constant 0 : i32
    return %c0_i32, %c0_i32_0 : i32, i32
  }
  func.func @transform_7(%arg0: i32, %arg1: i32) -> (i32, i32, i32) {
    %c0_i32 = arith.constant 0 : i32
    %c0_i32_0 = arith.constant 0 : i32
    return %arg0, %arg1, %c0_i32 : i32, i32, i32
  }
}

module attributes {stable_mosaic.version = 11 : i64} {
  func.func @_mha_kernel(%arg0: i32, %arg1: i32, %arg2: memref<1x8x32xf32, #tpu.memory_space<vmem>>, %arg3: memref<1x8x32xf32, #tpu.memory_space<vmem>>, %arg4: memref<32x32xf32, #tpu.memory_space<vmem>>, %arg5: memref<32x32xf32, #tpu.memory_space<vmem>>, %arg6: memref<32x32xf32, #tpu.memory_space<vmem>>, %arg7: memref<32x32xf32, #tpu.memory_space<vmem>>, %arg8: memref<1x32xf32, #tpu.memory_space<vmem>>, %arg9: memref<1x8x32xf32, #tpu.memory_space<vmem>>) attributes {dimension_semantics = [#tpu.dimension_semantics<parallel>, #tpu.dimension_semantics<parallel>], iteration_bounds = array<i64: 2, 1>, scalar_prefetch = 0 : i64, scratch_operands = 0 : i64, tpu.core_type = #tpu.core_type<tc>, window_params = [{transform_indices = @transform_0, window_bounds = array<i64: 1, 8, 32>}, {transform_indices = @transform_1, window_bounds = array<i64: 1, 8, 32>}, {pipeline_mode = #tpu.pipeline_mode<synchronous>, transform_indices = @transform_2, window_bounds = array<i64: 32, 32>}, {pipeline_mode = #tpu.pipeline_mode<synchronous>, transform_indices = @transform_3, window_bounds = array<i64: 32, 32>}, {pipeline_mode = #tpu.pipeline_mode<synchronous>, transform_indices = @transform_4, window_bounds = array<i64: 32, 32>}, {pipeline_mode = #tpu.pipeline_mode<synchronous>, transform_indices = @transform_5, window_bounds = array<i64: 32, 32>}, {pipeline_mode = #tpu.pipeline_mode<synchronous>, transform_indices = @transform_6, window_bounds = array<i64: 1, 32>}, {transform_indices = @transform_7, window_bounds = array<i64: 1, 8, 32>}]} {
    %c8_i32 = arith.constant 8 : i32
    %0 = arith.muli %arg1, %c8_i32 : i32
    %c0 = arith.constant 0 : index
    %c0_0 = arith.constant 0 : index
    %c0_1 = arith.constant 0 : index
    %1 = vector.load %arg2[%c0, %c0_0, %c0_1] : memref<1x8x32xf32, #tpu.memory_space<vmem>>, vector<1x8x32xf32>
    %2 = vector.shape_cast %1 : vector<1x8x32xf32> to vector<8x32xf32>
    %c0_2 = arith.constant 0 : index
    %c0_3 = arith.constant 0 : index
    %c0_4 = arith.constant 0 : index
    %3 = vector.load %arg3[%c0_2, %c0_3, %c0_4] : memref<1x8x32xf32, #tpu.memory_space<vmem>>, vector<1x8x32xf32>
    %4 = vector.shape_cast %3 : vector<1x8x32xf32> to vector<8x32xf32>
    %c0_5 = arith.constant 0 : index
    %c0_6 = arith.constant 0 : index
    %5 = vector.load %arg5[%c0_5, %c0_6] : memref<32x32xf32, #tpu.memory_space<vmem>>, vector<32x32xf32>
    %cst = arith.constant dense<0.000000e+00> : vector<8x32xf32>
    %6 = tpu.matmul %2, %5, %cst {dimension_numbers = #tpu.dot_dimension_numbers<[1], [0], [0], [1], [0, 0, 1, 1], [], []>} : vector<8x32xf32>, vector<32x32xf32>, vector<8x32xf32> -> vector<8x32xf32>
    %c0_7 = arith.constant 0 : index
    %c0_8 = arith.constant 0 : index
    %7 = vector.load %arg6[%c0_7, %c0_8] : memref<32x32xf32, #tpu.memory_space<vmem>>, vector<32x32xf32>
    %cst_9 = arith.constant dense<0.000000e+00> : vector<8x32xf32>
    %8 = tpu.matmul %2, %7, %cst_9 {dimension_numbers = #tpu.dot_dimension_numbers<[1], [0], [0], [1], [0, 0, 1, 1], [], []>} : vector<8x32xf32>, vector<32x32xf32>, vector<8x32xf32> -> vector<8x32xf32>
    %c0_10 = arith.constant 0 : index
    %c0_11 = arith.constant 0 : index
    %9 = vector.load %arg4[%c0_10, %c0_11] : memref<32x32xf32, #tpu.memory_space<vmem>>, vector<32x32xf32>
    %cst_12 = arith.constant dense<0.000000e+00> : vector<8x32xf32>
    %10 = tpu.matmul %4, %9, %cst_12 {dimension_numbers = #tpu.dot_dimension_numbers<[1], [0], [0], [1], [0, 0, 1, 1], [], []>} : vector<8x32xf32>, vector<32x32xf32>, vector<8x32xf32> -> vector<8x32xf32>
    %cst_13 = arith.constant 0.353553385 : f32
    %11 = vector.broadcast %cst_13 : f32 to vector<8x32xf32>
    %12 = arith.mulf %10, %11 : vector<8x32xf32>
    %13 = vector.shape_cast %12 : vector<8x32xf32> to vector<8x4x8xf32>
    %14 = tpu.transpose %13, [1, 0, 2] : vector<8x4x8xf32> -> vector<4x8x8xf32>
    %15 = vector.shape_cast %6 : vector<8x32xf32> to vector<8x4x8xf32>
    %16 = tpu.transpose %15, [1, 0, 2] : vector<8x4x8xf32> -> vector<4x8x8xf32>
    %17 = vector.shape_cast %8 : vector<8x32xf32> to vector<8x4x8xf32>
    %18 = tpu.transpose %17, [1, 0, 2] : vector<8x4x8xf32> -> vector<4x8x8xf32>
    "tpu.trace_start"() <{level = 10 : i32, message = "hqd,hkd->hqk"}> : () -> ()
    %cst_14 = arith.constant dense<0.000000e+00> : vector<4x8x8xf32>
    %19 = tpu.matmul %14, %16, %cst_14 {dimension_numbers = #tpu.dot_dimension_numbers<[2], [2], [1], [1], [0, 0, 0, 1, 1, 1], [0], [0]>} : vector<4x8x8xf32>, vector<4x8x8xf32>, vector<4x8x8xf32> -> vector<4x8x8xf32>
    "tpu.trace_stop"() : () -> ()
    %20 = tpu.iota {dimensions = array<i32: 0>} : vector<8x8xi32>
    %21 = vector.broadcast %0 : i32 to vector<8x8xi32>
    %22 = arith.addi %20, %21 : vector<8x8xi32>
    %23 = tpu.iota {dimensions = array<i32: 1>} : vector<8x8xi32>
    %24 = arith.cmpi sgt, %23, %22 : vector<8x8xi32>
    %c8_i32_15 = arith.constant 8 : i32
    %25 = vector.broadcast %c8_i32_15 : i32 to vector<8x8xi32>
    %26 = arith.cmpi sge, %23, %25 : vector<8x8xi32>
    %27 = arith.ori %24, %26 : vector<8x8xi1>
    %cst_16 = arith.constant -1.000000e+30 : f32
    %cst_17 = arith.constant 0.000000e+00 : f32
    %28 = vector.broadcast %cst_16 : f32 to vector<8x8xf32>
    %29 = vector.broadcast %cst_17 : f32 to vector<8x8xf32>
    %30 = arith.select %27, %28, %29 : vector<8x8xi1>, vector<8x8xf32>
    %31 = vector.shape_cast %30 : vector<8x8xf32> to vector<1x8x8xf32>
    %32 = vector.broadcast %31 : vector<1x8x8xf32> to vector<4x8x8xf32>
    %33 = arith.addf %19, %32 : vector<4x8x8xf32>
    %cst_18 = arith.constant dense<0xFF800000> : vector<4x8xf32>
    %34 = vector.multi_reduction <maximumf>, %33, %cst_18 [2] : vector<4x8x8xf32> to vector<4x8xf32>
    %35 = vector.shape_cast %34 : vector<4x8xf32> to vector<4x8x1xf32>
    %36 = vector.broadcast %35 : vector<4x8x1xf32> to vector<4x8x8xf32>
    %37 = arith.subf %33, %36 : vector<4x8x8xf32>
    %38 = math.exp %37 : vector<4x8x8xf32>
    %cst_19 = arith.constant dense<0.000000e+00> : vector<4x8xf32>
    %39 = vector.multi_reduction <add>, %38, %cst_19 [2] : vector<4x8x8xf32> to vector<4x8xf32>
    %40 = vector.shape_cast %39 : vector<4x8xf32> to vector<4x8x1xf32>
    %41 = tpu.reciprocal %40 : vector<4x8x1xf32> -> vector<4x8x1xf32>
    %42 = vector.broadcast %41 : vector<4x8x1xf32> to vector<4x8x8xf32>
    %43 = arith.mulf %38, %42 : vector<4x8x8xf32>
    "tpu.trace_start"() <{level = 10 : i32, message = "hqk,hkd->hqd"}> : () -> ()
    %cst_20 = arith.constant dense<0.000000e+00> : vector<4x8x8xf32>
    %44 = tpu.matmul %43, %18, %cst_20 {dimension_numbers = #tpu.dot_dimension_numbers<[2], [1], [1], [2], [0, 0, 0, 1, 1, 2], [0], [0]>} : vector<4x8x8xf32>, vector<4x8x8xf32>, vector<4x8x8xf32> -> vector<4x8x8xf32>
    "tpu.trace_stop"() : () -> ()
    %45 = tpu.transpose %44, [1, 0, 2] : vector<4x8x8xf32> -> vector<8x4x8xf32>
    %46 = vector.shape_cast %45 : vector<8x4x8xf32> to vector<8x32xf32>
    %c0_21 = arith.constant 0 : index
    %c0_22 = arith.constant 0 : index
    %47 = vector.load %arg7[%c0_21, %c0_22] : memref<32x32xf32, #tpu.memory_space<vmem>>, vector<32x32xf32>
    %cst_23 = arith.constant dense<0.000000e+00> : vector<8x32xf32>
    %48 = tpu.matmul %46, %47, %cst_23 {dimension_numbers = #tpu.dot_dimension_numbers<[1], [0], [0], [1], [0, 0, 1, 1], [], []>} : vector<8x32xf32>, vector<32x32xf32>, vector<8x32xf32> -> vector<8x32xf32>
    %c0_24 = arith.constant 0 : index
    %c0_25 = arith.constant 0 : index
    %49 = vector.load %arg8[%c0_24, %c0_25] : memref<1x32xf32, #tpu.memory_space<vmem>>, vector<1x32xf32>
    %50 = vector.broadcast %49 : vector<1x32xf32> to vector<8x32xf32>
    %51 = arith.addf %48, %50 : vector<8x32xf32>
    %c0_26 = arith.constant 0 : index
    %c0_27 = arith.constant 0 : index
    %c0_28 = arith.constant 0 : index
    %52 = vector.load %arg9[%c0_26, %c0_27, %c0_28] : memref<1x8x32xf32, #tpu.memory_space<vmem>>, vector<1x8x32xf32>
    %53 = vector.shape_cast %52 : vector<1x8x32xf32> to vector<8x32xf32>
    %54 = vector.shape_cast %51 : vector<8x32xf32> to vector<1x8x32xf32>
    tpu.vector_store %arg9[%c0_26, %c0_27, %c0_28], %54 {strides = array<i32>} : memref<1x8x32xf32, #tpu.memory_space<vmem>>, vector<1x8x32xf32>,
    return
  }
  func.func @transform_0(%arg0: i32, %arg1: i32) -> (i32, i32, i32) {
    %c0_i32 = arith.constant 0 : i32
    %c0_i32_0 = arith.constant 0 : i32
    %c0_i32_1 = arith.constant 0 : i32
    return %arg0, %c0_i32, %c0_i32_0 : i32, i32, i32
  }
  func.func @transform_1(%arg0: i32, %arg1: i32) -> (i32, i32, i32) {
    %c0_i32 = arith.constant 0 : i32
    %c0_i32_0 = arith.constant 0 : i32
    return %arg0, %arg1, %c0_i32 : i32, i32, i32
  }
  func.func @transform_2(%arg0: i32, %arg1: i32) -> (i32, i32) {
    %c0_i32 = arith.constant 0 : i32
    %c0_i32_0 = arith.constant 0 : i32
    %c0_i32_1 = arith.constant 0 : i32
    return %c0_i32, %c0_i32_0 : i32, i32
  }
  func.func @transform_3(%arg0: i32, %arg1: i32) -> (i32, i32) {
    %c0_i32 = arith.constant 0 : i32
    %c0_i32_0 = arith.constant 0 : i32
    %c0_i32_1 = arith.constant 0 : i32
    return %c0_i32, %c0_i32_0 : i32, i32
  }
  func.func @transform_4(%arg0: i32, %arg1: i32) -> (i32, i32) {
    %c0_i32 = arith.constant 0 : i32
    %c0_i32_0 = arith.constant 0 : i32
    %c0_i32_1 = arith.constant 0 : i32
    return %c0_i32, %c0_i32_0 : i32, i32
  }
  func.func @transform_5(%arg0: i32, %arg1: i32) -> (i32, i32) {
    %c0_i32 = arith.constant 0 : i32
    %c0_i32_0 = arith.constant 0 : i32
    %c0_i32_1 = arith.constant 0 : i32
    return %c0_i32, %c0_i32_0 : i32, i32
  }
  func.func @transform_6(%arg0: i32, %arg1: i32) -> (i32, i32) {
    %c0_i32 = arith.constant 0 : i32
    %c0_i32_0 = arith.constant 0 : i32
    %c0_i32_1 = arith.constant 0 : i32
    return %c0_i32, %c0_i32_0 : i32, i32
  }
  func.func @transform_7(%arg0: i32, %arg1: i32) -> (i32, i32, i32) {
    %c0_i32 = arith.constant 0 : i32
    %c0_i32_0 = arith.constant 0 : i32
    return %arg0, %arg1, %c0_i32 : i32, i32, i32
  }
}

</mosaic_0001>

<llo_original>
// kernel: tpu_custom_call.1
$region0: #{tpu_custom_call.1}
  #allocation0 [shape = 'u32[]', space=smem, size = 0x4, offset = 0x4, fixed_abs, tag = 'smem constant byte address 0x4 - core index']
  #allocation1 [shape = 'u32[72,128]{1,0:T(1,128)}', space=vmem, size = 0x9000, scoped, tag = 'internal scratch']
  %s0 = inlined_call_operand.hbm [shape: f32[2,8,32], index: 0, kind: input, shape index: {}]
  %s1 = inlined_call_operand.hbm [shape: f32[2,8,32], index: 1, kind: input, shape index: {}]
  %s2 = inlined_call_operand.hbm [shape: f32[32,32], index: 2, kind: input, shape index: {}]
  %s3 = inlined_call_operand.hbm [shape: f32[32,32], index: 3, kind: input, shape index: {}]
  %s4 = inlined_call_operand.hbm [shape: f32[32,32], index: 4, kind: input, shape index: {}]
  %s5 = inlined_call_operand.hbm [shape: f32[32,32], index: 5, kind: input, shape index: {}]
  %s6 = inlined_call_operand.vmem [shape: f32[1,32], index: 6, kind: input, shape index: {}]
  %s7 = inlined_call_operand.hbm [shape: f32[2,8,32], index: 7, kind: output, shape index: {}]
  %s8 = sld [smem:[#allocation0]]
  $region85: #{tpu_custom_call.1} parent=0
    _
  %s10 = ssub.s32 1, %s8
  %s11 = scalar_select 0, %s10, %s8
  $region1: #{tpu_custom_call.1} parent=0
    #allocation2 [shape = 'u8[8192]{0}', space=vmem, size = 0x2000, scoped, tag = 'input window, operand 0']
    #allocation3 [shape = 's32[2]{0}', space=sflag, size = 0x8, scoped, tag = 'scoped memory for tpu_custom_call.1']
    #allocation4 [shape = 's32[2]{0}', space=sflag, size = 0x8, scoped, tag = 'scoped memory for tpu_custom_call.1']
    #allocation5 [shape = 'u8[8192]{0}', space=vmem, size = 0x2000, scoped, tag = 'input window, operand 1']
    #allocation6 [shape = 's32[2]{0}', space=sflag, size = 0x8, scoped, tag = 'scoped memory for tpu_custom_call.1']
    #allocation7 [shape = 'u8[16384]{0}', space=vmem, size = 0x4000, scoped, tag = 'input window, operand 2, single buffered']
    #allocation8 [shape = 'u8[16384]{0}', space=vmem, size = 0x4000, scoped, tag = 'input window, operand 3, single buffered']
    #allocation9 [shape = 's32[1]{0}', space=sflag, size = 0x4, scoped, tag = 'scoped memory for tpu_custom_call.1']
    #allocation10 [shape = 'u8[16384]{0}', space=vmem, size = 0x4000, scoped, tag = 'input window, operand 4, single buffered']
    #allocation11 [shape = 'u8[16384]{0}', space=vmem, size = 0x4000, scoped, tag = 'input window, operand 5, single buffered']
    #allocation12 [shape = 's32[1]{0}', space=sflag, size = 0x4, scoped, tag = 'scoped memory for tpu_custom_call.1']
    #allocation13 [shape = 'u8[8192]{0}', space=vmem, size = 0x2000, scoped, tag = 'output window, operand 0']
    %12 = vsyncpa [#allocation3], 0
    %s13 = scalar_lea.sflag [#allocation3], 1
    %14 = vsyncpa %s13, 0
    %15 = vsyncpa [#allocation6], 0
    %s16 = scalar_lea.sflag [#allocation6], 1
    %17 = vsyncpa %s16, 0
    %18 = vsyncpa [#allocation9], 0
    %19 = vsyncpa [#allocation12], 0
    %20 = vsyncpa [#allocation4], 0
    %s21 = scalar_lea.sflag [#allocation4], 1
    %22 = vsyncpa %s21, 0
    loop: start=0, step=1, limit=4
    $region2: #{tpu_custom_call.1} parent=1 // loop_pre_header
      _
    $region3: #{tpu_custom_call.1} parent=1 // loop_header
      %s24 = sphi 0, %s28
      %p25 = scmp.ge.s32.totalorder %s24, 4
      %s31 = sphi 0, %s43
      %s32 = sphi 0, %s39
      %s33 = sphi 0, %s31
      %s34 = sphi 0, %s32
      %s35 = sphi 0, %s33
      %s36 = sphi 0, %s34
      %s46 = sphi 0, %s48
      %s49 = sphi 0, %s46
      %s50 = sphi 0, %s49
      %s66 = sphi 0, %s50
      %s74 = sphi 0, %s76
      %s77 = sphi 0, %s74
      %s78 = sphi 0, %s77
      %s94 = sphi 0, %s78
      %s98 = sphi 0, %s98
      %s100 = sphi 0, %s98
      %s101 = sphi 0, %s100
      %s115 = sphi 0, %s101
      %s119 = sphi 0, %s119
      %s121 = sphi 0, %s119
      %s122 = sphi 0, %s121
      %s136 = sphi 0, %s122
      %s140 = sphi 0, %s140
      %s142 = sphi 0, %s140
      %s143 = sphi 0, %s142
      %s157 = sphi 0, %s143
      %s161 = sphi 0, %s161
      %s163 = sphi 0, %s161
      %s164 = sphi 0, %s163
      %s178 = sphi 0, %s164
      %s182 = sphi 0, %s182
      %s184 = sphi 0, %s182
      %s185 = sphi 0, %s184
      %s199 = sphi 0, %s185
      %s207 = sphi 0, %s209
      %s210 = sphi 0, %s207
      %s211 = sphi 0, %s210
      %s227 = sphi 0, %s211
    $region4: #{tpu_custom_call.1} parent=1 // loop_header_branch
      %27 = sbr.rel (%p25) target = $region8
    $region5: #{tpu_custom_call.1} parent=1 // loop_body
      %s29 = ssub.s32 %s24, 1
      %s30 = ssub.s32 %s24, 2
      %s37 = sadd.s32 1, %s32
      %p38 = scmp.ge.s32.totalorder %s37, 1
      %s39 = scalar_select %p38, 0, %s37
      %s40 = sadd.s32 1, %s31
      %s41 = scalar_select %p38, %s40, %s31
      %p42 = scmp.ge.s32.totalorder %s41, 2
      %s43 = scalar_select %p42, 0, %s41
      %s44 = ssub.s32 %s31, %s43
      %p45 = scmp.eq.s32.totalorder %s44, 0
      %s47 = sadd.s32 %s46, 1
      %s48 = scalar_select %p45, %s46, %s47
      %p51 = pneg %p45
      %p52 = scmp.eq.s32.totalorder %s24, 1
      %p53 = por %p51, %p52
      %p54 = scmp.ne.s32.totalorder %s46, %s49
      %p55 = scmp.eq.s32.totalorder %s24, 0
      %p56 = por %p54, %p55
      %p57 = scmp.ne.s32.totalorder %s46, %s49
      %p58 = scmp.eq.s32.totalorder %s29, 1
      %p59 = por %p57, %p58
      %p60 = scmp.ne.s32.totalorder %s49, %s50
      %p61 = scmp.eq.s32.totalorder %s29, 0
      %p62 = por %p60, %p61
      %p63 = scmp.ne.s32.totalorder %s49, %s50
      %p64 = scmp.eq.s32.totalorder %s30, 1
      %p65 = por %p63, %p64
      %p67 = scmp.ne.s32.totalorder %s50, %s66
      %p68 = scmp.eq.s32.totalorder %s30, 0
      %p69 = por %p67, %p68
      %s70 = ssub.s32 %s31, %s43
      %s71 = ssub.s32 %s32, %s39
      %s72 = sor.u32 %s70, %s71
      %p73 = scmp.eq.s32.totalorder %s72, 0
      %s75 = sadd.s32 %s74, 1
      %s76 = scalar_select %p73, %s74, %s75
      %p79 = pneg %p73
      %p80 = scmp.eq.s32.totalorder %s24, 1
      %p81 = por %p79, %p80
      %p82 = scmp.ne.s32.totalorder %s74, %s77
      %p83 = scmp.eq.s32.totalorder %s24, 0
      %p84 = por %p82, %p83
      %p85 = scmp.ne.s32.totalorder %s74, %s77
      %p86 = scmp.eq.s32.totalorder %s29, 1
      %p87 = por %p85, %p86
      %p88 = scmp.ne.s32.totalorder %s77, %s78
      %p89 = scmp.eq.s32.totalorder %s29, 0
      %p90 = por %p88, %p89
      %p91 = scmp.ne.s32.totalorder %s77, %s78
      %p92 = scmp.eq.s32.totalorder %s30, 1
      %p93 = por %p91, %p92
      %p95 = scmp.ne.s32.totalorder %s78, %s94
      %p96 = scmp.eq.s32.totalorder %s30, 0
      %p97 = por %p95, %p96
      %s99 = sadd.s32 %s98, 1
      %p102 = scmp.eq.s32.totalorder %s24, 1
      %p103 = scmp.ne.s32.totalorder %s98, %s100
      %p104 = scmp.eq.s32.totalorder %s24, 0
      %p105 = por %p103, %p104
      %p106 = scmp.ne.s32.totalorder %s98, %s100
      %p107 = scmp.eq.s32.totalorder %s29, 1
      %p108 = por %p106, %p107
      %p109 = scmp.ne.s32.totalorder %s100, %s101
      %p110 = scmp.eq.s32.totalorder %s29, 0
      %p111 = por %p109, %p110
      %p112 = scmp.ne.s32.totalorder %s100, %s101
      %p113 = scmp.eq.s32.totalorder %s30, 1
      %p114 = por %p112, %p113
      %p116 = scmp.ne.s32.totalorder %s101, %s115
      %p117 = scmp.eq.s32.totalorder %s30, 0
      %p118 = por %p116, %p117
      %s120 = sadd.s32 %s119, 1
      %p123 = scmp.eq.s32.totalorder %s24, 1
      %p124 = scmp.ne.s32.totalorder %s119, %s121
      %p125 = scmp.eq.s32.totalorder %s24, 0
      %p126 = por %p124, %p125
      %p127 = scmp.ne.s32.totalorder %s119, %s121
      %p128 = scmp.eq.s32.totalorder %s29, 1
      %p129 = por %p127, %p128
      %p130 = scmp.ne.s32.totalorder %s121, %s122
      %p131 = scmp.eq.s32.totalorder %s29, 0
      %p132 = por %p130, %p131
      %p133 = scmp.ne.s32.totalorder %s121, %s122
      %p134 = scmp.eq.s32.totalorder %s30, 1
      %p135 = por %p133, %p134
      %p137 = scmp.ne.s32.totalorder %s122, %s136
      %p138 = scmp.eq.s32.totalorder %s30, 0
      %p139 = por %p137, %p138
      %s141 = sadd.s32 %s140, 1
      %p144 = scmp.eq.s32.totalorder %s24, 1
      %p145 = scmp.ne.s32.totalorder %s140, %s142
      %p146 = scmp.eq.s32.totalorder %s24, 0
      %p147 = por %p145, %p146
      %p148 = scmp.ne.s32.totalorder %s140, %s142
      %p149 = scmp.eq.s32.totalorder %s29, 1
      %p150 = por %p148, %p149
      %p151 = scmp.ne.s32.totalorder %s142, %s143
      %p152 = scmp.eq.s32.totalorder %s29, 0
      %p153 = por %p151, %p152
      %p154 = scmp.ne.s32.totalorder %s142, %s143
      %p155 = scmp.eq.s32.totalorder %s30, 1
      %p156 = por %p154, %p155
      %p158 = scmp.ne.s32.totalorder %s143, %s157
      %p159 = scmp.eq.s32.totalorder %s30, 0
      %p160 = por %p158, %p159
      %s162 = sadd.s32 %s161, 1
      %p165 = scmp.eq.s32.totalorder %s24, 1
      %p166 = scmp.ne.s32.totalorder %s161, %s163
      %p167 = scmp.eq.s32.totalorder %s24, 0
      %p168 = por %p166, %p167
      %p169 = scmp.ne.s32.totalorder %s161, %s163
      %p170 = scmp.eq.s32.totalorder %s29, 1
      %p171 = por %p169, %p170
      %p172 = scmp.ne.s32.totalorder %s163, %s164
      %p173 = scmp.eq.s32.totalorder %s29, 0
      %p174 = por %p172, %p173
      %p175 = scmp.ne.s32.totalorder %s163, %s164
      %p176 = scmp.eq.s32.totalorder %s30, 1
      %p177 = por %p175, %p176
      %p179 = scmp.ne.s32.totalorder %s164, %s178
      %p180 = scmp.eq.s32.totalorder %s30, 0
      %p181 = por %p179, %p180
      %s183 = sadd.s32 %s182, 1
      %p186 = scmp.eq.s32.totalorder %s24, 1
      %p187 = scmp.ne.s32.totalorder %s182, %s184
      %p188 = scmp.eq.s32.totalorder %s24, 0
      %p189 = por %p187, %p188
      %p190 = scmp.ne.s32.totalorder %s182, %s184
      %p191 = scmp.eq.s32.totalorder %s29, 1
      %p192 = por %p190, %p191
      %p193 = scmp.ne.s32.totalorder %s184, %s185
      %p194 = scmp.eq.s32.totalorder %s29, 0
      %p195 = por %p193, %p194
      %p196 = scmp.ne.s32.totalorder %s184, %s185
      %p197 = scmp.eq.s32.totalorder %s30, 1
      %p198 = por %p196, %p197
      %p200 = scmp.ne.s32.totalorder %s185, %s199
      %p201 = scmp.eq.s32.totalorder %s30, 0
      %p202 = por %p200, %p201
      %s203 = ssub.s32 %s31, %s43
      %s204 = ssub.s32 %s32, %s39
      %s205 = sor.u32 %s203, %s204
      %p206 = scmp.eq.s32.totalorder %s205, 0
      %s208 = sadd.s32 %s207, 1
      %s209 = scalar_select %p206, %s207, %s208
      %p212 = pneg %p206
      %p213 = scmp.eq.s32.totalorder %s24, 1
      %p214 = por %p212, %p213
      %p215 = scmp.ne.s32.totalorder %s207, %s210
      %p216 = scmp.eq.s32.totalorder %s24, 0
      %p217 = por %p215, %p216
      %p218 = scmp.ne.s32.totalorder %s207, %s210
      %p219 = scmp.eq.s32.totalorder %s29, 1
      %p220 = por %p218, %p219
      %p221 = scmp.ne.s32.totalorder %s210, %s211
      %p222 = scmp.eq.s32.totalorder %s29, 0
      %p223 = por %p221, %p222
      %p224 = scmp.ne.s32.totalorder %s210, %s211
      %p225 = scmp.eq.s32.totalorder %s30, 1
      %p226 = por %p224, %p225
      %p228 = scmp.ne.s32.totalorder %s211, %s227
      %p229 = scmp.eq.s32.totalorder %s30, 0
      %p230 = por %p228, %p229
      %p231 = scmp.le.s32.totalorder 1, %s24
      %p232 = scmp.lt.s32.totalorder %s24, 3
      %p233 = pnand %p231, %p232
      %p234 = pneg %p233
      // Predicated region
      $region9: #{tpu_custom_call.1} parent=5 // pred_check
        _
      $region10: #{tpu_custom_call.1} parent=5 // pred_check_branch
        %236 = sbr.rel (%p233) target = $region12
      $region11: #{tpu_custom_call.1} parent=5 // pred_region
        %s237 = ssub.s32 %s24, 1
        // Predicated region
        $region13: #{tpu_custom_call.1} parent=11 // pred_check
          %p238 = pneg %p111
        $region14: #{tpu_custom_call.1} parent=11 // pred_check_branch
          %240 = sbr.rel (%p238) target = $region16
        $region15: #{tpu_custom_call.1} parent=11 // pred_region
          %242 = vsyncadd [#allocation6], 0
          %s243 = sshll.u32 %s2, 4
          %s244 = int_to_ptr.hbm [resolvable:$true] %s243
          %s245 = sshll.u32 [#allocation7], 4
          %s246 = int_to_ptr.vmem [resolvable:$true] %s245
          %251 = dma.hbm_to_vmem [thread:$0]  %s244, 512, %s246, [#allocation6], 128, 128, 8
        $region16: #{tpu_custom_call.1} parent=11 // pred_fallthru
          _
        // Predicated region
        $region17: #{tpu_custom_call.1} parent=11 // pred_check
          %p252 = pneg %p132
        $region18: #{tpu_custom_call.1} parent=11 // pred_check_branch
          %254 = sbr.rel (%p252) target = $region20
        $region19: #{tpu_custom_call.1} parent=11 // pred_region
          %256 = vsyncadd [#allocation9], 0
          %s257 = sshll.u32 %s3, 4
          %s258 = int_to_ptr.hbm [resolvable:$true] %s257
          %s259 = sshll.u32 [#allocation8], 4
          %s260 = int_to_ptr.vmem [resolvable:$true] %s259
          %265 = dma.hbm_to_vmem [thread:$0]  %s258, 512, %s260, [#allocation9], 128, 128, 8
        $region20: #{tpu_custom_call.1} parent=11 // pred_fallthru
          _
        // Predicated region
        $region21: #{tpu_custom_call.1} parent=11 // pred_check
          %p266 = pneg %p153
        $region22: #{tpu_custom_call.1} parent=11 // pred_check_branch
          %268 = sbr.rel (%p266) target = $region24
        $region23: #{tpu_custom_call.1} parent=11 // pred_region
          %270 = vsyncadd [#allocation9], 0
          %s271 = sshll.u32 %s4, 4
          %s272 = int_to_ptr.hbm [resolvable:$true] %s271
          %s273 = sshll.u32 [#allocation10], 4
          %s274 = int_to_ptr.vmem [resolvable:$true] %s273
          %279 = dma.hbm_to_vmem [thread:$0]  %s272, 512, %s274, [#allocation9], 128, 128, 8
        $region24: #{tpu_custom_call.1} parent=11 // pred_fallthru
          _
        // Predicated region
        $region25: #{tpu_custom_call.1} parent=11 // pred_check
          %p280 = pneg %p174
        $region26: #{tpu_custom_call.1} parent=11 // pred_check_branch
          %282 = sbr.rel (%p280) target = $region28
        $region27: #{tpu_custom_call.1} parent=11 // pred_region
          %284 = vsyncadd [#allocation12], 0
          %s285 = sshll.u32 %s5, 4
          %s286 = int_to_ptr.hbm [resolvable:$true] %s285
          %s287 = sshll.u32 [#allocation11], 4
          %s288 = int_to_ptr.vmem [resolvable:$true] %s287
          %293 = dma.hbm_to_vmem [thread:$0]  %s286, 512, %s288, [#allocation12], 128, 128, 8
        $region28: #{tpu_custom_call.1} parent=11 // pred_fallthru
          _
        // Predicated region
        $region29: #{tpu_custom_call.1} parent=11 // pred_check
          %p294 = pneg %p195
        $region30: #{tpu_custom_call.1} parent=11 // pred_check_branch
          %296 = sbr.rel (%p294) target = $region32
        $region31: #{tpu_custom_call.1} parent=11 // pred_region
          _
        $region32: #{tpu_custom_call.1} parent=11 // pred_fallthru
          _
      $region12: #{tpu_custom_call.1} parent=5 // pred_fallthru
        _
      %p297 = scmp.lt.s32.totalorder %s24, 2
      // Predicated region
      $region33: #{tpu_custom_call.1} parent=5 // pred_check
        %p298 = pneg %p297
      $region34: #{tpu_custom_call.1} parent=5 // pred_check_branch
        %300 = sbr.rel (%p298) target = $region36
      $region35: #{tpu_custom_call.1} parent=5 // pred_region
        // Predicated region
        $region37: #{tpu_custom_call.1} parent=35 // pred_check
          %p301 = pneg %p56
        $region38: #{tpu_custom_call.1} parent=35 // pred_check_branch
          %303 = sbr.rel (%p301) target = $region40
        $region39: #{tpu_custom_call.1} parent=35 // pred_region
          %s304 = sand.u32 %s46, 1
          %s305 = scalar_lea.sflag [#allocation3], %s304
          %s306 = sand.u32 %s46, 1
          %s307 = smul.addr %s306, 8
          %s308 = scalar_lea.vmem [#allocation2], %s307
          %310 = vsyncadd %s305, 0
          %s311 = smul.addr %s31, 8
          %s312 = scalar_lea.hbm %s0, %s311
          %s314 = sshll.u32 %s312, 4
          %s315 = int_to_ptr.hbm [resolvable:$true] %s314
          %s316 = sshll.u32 %s308, 4
          %s317 = int_to_ptr.vmem [resolvable:$true] %s316
          %319 = dma.hbm_to_vmem [thread:$0]  %s315, 128, %s317, %s305
        $region40: #{tpu_custom_call.1} parent=35 // pred_fallthru
          _
        // Predicated region
        $region41: #{tpu_custom_call.1} parent=35 // pred_check
          %p320 = pneg %p84
        $region42: #{tpu_custom_call.1} parent=35 // pred_check_branch
          %322 = sbr.rel (%p320) target = $region44
        $region43: #{tpu_custom_call.1} parent=35 // pred_region
          %s323 = sand.u32 %s24, 1
          %s324 = scalar_lea.sflag [#allocation6], %s323
          %s325 = sand.u32 %s74, 1
          %s326 = smul.addr %s325, 8
          %s327 = scalar_lea.vmem [#allocation5], %s326
          %329 = vsyncadd %s324, 0
          %s330 = sadd.s32 %s32, %s31
          %s331 = smul.addr %s330, 8
          %s332 = scalar_lea.hbm %s1, %s331
          %s334 = sshll.u32 %s332, 4
          %s335 = int_to_ptr.hbm [resolvable:$true] %s334
          %s336 = sshll.u32 %s327, 4
          %s337 = int_to_ptr.vmem [resolvable:$true] %s336
          %339 = dma.hbm_to_vmem [thread:$0]  %s335, 128, %s337, %s324
        $region44: #{tpu_custom_call.1} parent=35 // pred_fallthru
          _
      $region36: #{tpu_custom_call.1} parent=5 // pred_fallthru
        _
      %p340 = scmp.le.s32.totalorder 1, %s24
      %p341 = scmp.lt.s32.totalorder %s24, 3
      %p342 = pnand %p340, %p341
      %p343 = pneg %p342
      // Predicated region
      $region45: #{tpu_custom_call.1} parent=5 // pred_check
        _
      $region46: #{tpu_custom_call.1} parent=5 // pred_check_branch
        %345 = sbr.rel (%p342) target = $region48
      $region47: #{tpu_custom_call.1} parent=5 // pred_region
        %s346 = ssub.s32 %s24, 1
        %s347 = sand.u32 %s49, 1
        %s348 = scalar_lea.sflag [#allocation3], %s347
        %s349 = sand.u32 %s49, 1
        %s350 = smul.addr %s349, 8
        %s351 = scalar_lea.vmem [#allocation2], %s350
        // Predicated region
        $region49: #{tpu_custom_call.1} parent=47 // pred_check
          %p352 = pneg %p62
        $region50: #{tpu_custom_call.1} parent=47 // pred_check_branch
          %354 = sbr.rel (%p352) target = $region52
        $region51: #{tpu_custom_call.1} parent=47 // pred_region
          %356 = dma.done %s348, 128
        $region52: #{tpu_custom_call.1} parent=47 // pred_fallthru
          _
        %s357 = sand.u32 %s29, 1
        %s358 = scalar_lea.sflag [#allocation6], %s357
        %s359 = sand.u32 %s77, 1
        %s360 = smul.addr %s359, 8
        %s361 = scalar_lea.vmem [#allocation5], %s360
        // Predicated region
        $region53: #{tpu_custom_call.1} parent=47 // pred_check
          %p362 = pneg %p90
        $region54: #{tpu_custom_call.1} parent=47 // pred_check_branch
          %364 = sbr.rel (%p362) target = $region56
        $region55: #{tpu_custom_call.1} parent=47 // pred_region
          %366 = dma.done %s358, 128
        $region56: #{tpu_custom_call.1} parent=47 // pred_fallthru
          _
        // Predicated region
        $region57: #{tpu_custom_call.1} parent=47 // pred_check
          %p367 = pneg %p111
        $region58: #{tpu_custom_call.1} parent=47 // pred_check_branch
          %369 = sbr.rel (%p367) target = $region60
        $region59: #{tpu_custom_call.1} parent=47 // pred_region
          %371 = dma.done [#allocation6], 512
        $region60: #{tpu_custom_call.1} parent=47 // pred_fallthru
          _
        // Predicated region
        $region61: #{tpu_custom_call.1} parent=47 // pred_check
          %p372 = pneg %p132
        $region62: #{tpu_custom_call.1} parent=47 // pred_check_branch
          %374 = sbr.rel (%p372) target = $region64
        $region63: #{tpu_custom_call.1} parent=47 // pred_region
          %376 = dma.done [#allocation9], 512
        $region64: #{tpu_custom_call.1} parent=47 // pred_fallthru
          _
        // Predicated region
        $region65: #{tpu_custom_call.1} parent=47 // pred_check
          %p377 = pneg %p153
        $region66: #{tpu_custom_call.1} parent=47 // pred_check_branch
          %379 = sbr.rel (%p377) target = $region68
        $region67: #{tpu_custom_call.1} parent=47 // pred_region
          %381 = dma.done [#allocation9], 512
        $region68: #{tpu_custom_call.1} parent=47 // pred_fallthru
          _
        // Predicated region
        $region69: #{tpu_custom_call.1} parent=47 // pred_check
          %p382 = pneg %p174
        $region70: #{tpu_custom_call.1} parent=47 // pred_check_branch
          %384 = sbr.rel (%p382) target = $region72
        $region71: #{tpu_custom_call.1} parent=47 // pred_region
          %386 = dma.done [#allocation12], 512
        $region72: #{tpu_custom_call.1} parent=47 // pred_fallthru
          _
        %s387 = sand.u32 %s49, 1
        %s388 = scalar_lea.sflag [#allocation3], %s387
        %s389 = sand.u32 %s49, 1
        %s390 = smul.addr %s389, 8
        %s391 = scalar_lea.vmem [#allocation2], %s390
        %p392 = pneg %p62
        %p393 = pneg %p59
        %s394 = sand.u32 %s29, 1
        %s395 = scalar_lea.sflag [#allocation6], %s394
        %s396 = sand.u32 %s77, 1
        %s397 = smul.addr %s396, 8
        %s398 = scalar_lea.vmem [#allocation5], %s397
        %p399 = pneg %p90
        %p400 = pneg %p87
        %p401 = pneg %p111
        %p402 = pneg %p108
        %p403 = pneg %p132
        %p404 = pneg %p129
        %p405 = pneg %p153
        %p406 = pneg %p150
        %p407 = pneg %p174
        %p408 = pneg %p171
        %p409 = pneg %p195
        %p410 = pneg %p192
        %p411 = pneg %p223
        %p412 = pneg %p220
        %s413 = sand.u32 %s210, 1
        %s414 = scalar_lea.sflag [#allocation4], %s413
        %s415 = sand.u32 %s210, 1
        %s416 = smul.addr %s415, 8
        %s417 = scalar_lea.vmem [#allocation13], %s416
        %s418 = smul.u32 %s34, 8
        %v419 = vld [vmem:[%s351] sm:$0xff]
        %v420 = vld [vmem:[%s361] sm:$0xff]
        %v421 = vld [vmem:[#allocation8] sm:$0xff]
        %v422 = vld [vmem:[#allocation8 + $0x8] sm:$0xff]
        %v423 = vld [vmem:[#allocation8 + $0x10] sm:$0xff]
        %v424 = vld [vmem:[#allocation8 + $0x18] sm:$0xff]
        %vm425 = vcmask 261120
        %v427 = vsel %vm425, %v419, 0
        %429 = vmatpush.msra.mxu0 0.0
        %430 = vmatpush.msra.mxu0 0.0
        %431 = vmatpush.msra.mxu0 0.0
        %432 = vmatpush.msra.mxu0 0.0
        %433 = vmatpush.msra.mxu0 0.0
        %434 = vmatpush.msra.mxu0 0.0
        %435 = vmatpush.msra.mxu0 0.0
        %436 = vmatpush.msra.mxu0 0.0
        %437 = vmatpush.msra.mxu0 0.0
        %438 = vmatpush.msra.mxu0 0.0
        %439 = vmatpush.msra.mxu0 0.0
        %440 = vmatpush.msra.mxu0 0.0
        %441 = vmatpush.msra.mxu0 %v424
        %442 = vmatpush.msra.mxu0 %v423
        %443 = vmatpush.msra.mxu0 %v422
        %444 = vmatpush.msra.mxu0 %v421
        %445 = vmatmul.f32.gmra.mxu0 %v427
        %v446 = vpop.f32.mrf.mxu0
        %v447 = vadd.f32 0.0, %v446
        %448 = vdwg.mxu0
        %v449 = vld [vmem:[#allocation10] sm:$0xff]
        %v450 = vld [vmem:[#allocation10 + $0x8] sm:$0xff]
        %v451 = vld [vmem:[#allocation10 + $0x10] sm:$0xff]
        %v452 = vld [vmem:[#allocation10 + $0x18] sm:$0xff]
        %453 = vmatpush.msra.mxu0 0.0
        %454 = vmatpush.msra.mxu0 0.0
        %455 = vmatpush.msra.mxu0 0.0
        %456 = vmatpush.msra.mxu0 0.0
        %457 = vmatpush.msra.mxu0 0.0
        %458 = vmatpush.msra.mxu0 0.0
        %459 = vmatpush.msra.mxu0 0.0
        %460 = vmatpush.msra.mxu0 0.0
        %461 = vmatpush.msra.mxu0 0.0
        %462 = vmatpush.msra.mxu0 0.0
        %463 = vmatpush.msra.mxu0 0.0
        %464 = vmatpush.msra.mxu0 0.0
        %465 = vmatpush.msra.mxu0 %v452
        %466 = vmatpush.msra.mxu0 %v451
        %467 = vmatpush.msra.mxu0 %v450
        %468 = vmatpush.msra.mxu0 %v449
        %469 = vmatmul.f32.gmra.mxu0 %v427
        %v470 = vpop.f32.mrf.mxu0
        %v471 = vadd.f32 0.0, %v470
        %472 = vdwg.mxu0
        %v473 = vld [vmem:[#allocation7] sm:$0xff]
        %v474 = vld [vmem:[#allocation7 + $0x8] sm:$0xff]
        %v475 = vld [vmem:[#allocation7 + $0x10] sm:$0xff]
        %v476 = vld [vmem:[#allocation7 + $0x18] sm:$0xff]
        %v478 = vsel %vm425, %v420, 0
        %480 = vmatpush.msra.mxu0 0.0
        %481 = vmatpush.msra.mxu0 0.0
        %482 = vmatpush.msra.mxu0 0.0
        %483 = vmatpush.msra.mxu0 0.0
        %484 = vmatpush.msra.mxu0 0.0
        %485 = vmatpush.msra.mxu0 0.0
        %486 = vmatpush.msra.mxu0 0.0
        %487 = vmatpush.msra.mxu0 0.0
        %488 = vmatpush.msra.mxu0 0.0
        %489 = vmatpush.msra.mxu0 0.0
        %490 = vmatpush.msra.mxu0 0.0
        %491 = vmatpush.msra.mxu0 0.0
        %492 = vmatpush.msra.mxu0 %v476
        %493 = vmatpush.msra.mxu0 %v475
        %494 = vmatpush.msra.mxu0 %v474
        %495 = vmatpush.msra.mxu0 %v473
        %496 = vmatmul.f32.gmra.mxu0 %v478
        %v497 = vpop.f32.mrf.mxu0
        %v498 = vadd.f32 0.0, %v497
        %499 = vdwg.mxu0
        %v500 = vmul.f32 %v498, 0.35355338
        %502 = vrot.lane.b32.xlu0 %v500, 120
        %v503 = vpop.permute.xlu0 %502
        %505 = vrot.lane.b32.xlu0 %v500, 112
        %v506 = vpop.permute.xlu0 %505
        %508 = vrot.lane.b32.xlu0 %v500, 104
        %v509 = vpop.permute.xlu0 %508
        %v511 = vrot.slane %v506, 4
        %vm512 = vcmask 1047556
        %v513 = vsel %vm512, %v511, %v500
        %v514 = vrot.slane %v500, 4
        %v515 = vsel %vm512, %v506, %v514
        %v517 = vunpack.c.l.s4 1983009808
        %v518 = vunpack.c.0.s8 %v517
        %v519 = vperm.slane %v513, %v518
        %v521 = vunpack.c.l.s4 1983009808
        %v522 = vunpack.c.0.s8 %v521
        %v523 = vperm.slane %v515, %v522
        %v524 = vrot.slane %v509, 4
        %v525 = vsel %vm512, %v524, %v503
        %v526 = vrot.slane %v503, 4
        %v527 = vsel %vm512, %v509, %v526
        %v529 = vunpack.c.l.s4 1983009808
        %v530 = vunpack.c.0.s8 %v529
        %v531 = vperm.slane %v525, %v530
        %v533 = vunpack.c.l.s4 1983009808
        %v534 = vunpack.c.0.s8 %v533
        %v535 = vperm.slane %v527, %v534
        %v536 = vrot.slane %v531, 4
        %v537 = vsel %vm512, %v536, %v519
        %v538 = vrot.slane %v519, 4
        %v539 = vsel %vm512, %v531, %v538
        %v541 = vunpack.c.l.s4 1934713408
        %v542 = vunpack.c.0.s8 %v541
        %v543 = vperm.slane %v537, %v542
        %v545 = vunpack.c.l.s4 1934713408
        %v546 = vunpack.c.0.s8 %v545
        %v547 = vperm.slane %v539, %v546
        %v548 = vrot.slane %v535, 4
        %v549 = vsel %vm512, %v548, %v523
        %v550 = vrot.slane %v523, 4
        %v551 = vsel %vm512, %v535, %v550
        %v553 = vunpack.c.l.s4 1934713408
        %v554 = vunpack.c.0.s8 %v553
        %v555 = vperm.slane %v549, %v554
        %v557 = vunpack.c.l.s4 1934713408
        %v558 = vunpack.c.0.s8 %v557
        %v559 = vperm.slane %v551, %v558
        %v560 = vrot.slane %v543, 4
        %v561 = vsel %vm512, 0.0, %v560
        %v562 = vrot.slane %v547, 4
        %v563 = vsel %vm512, 0.0, %v562
        %v564 = vrot.slane %v555, 4
        %v565 = vsel %vm512, 0.0, %v564
        %v566 = vrot.slane %v559, 4
        %v567 = vsel %vm512, 0.0, %v566
        %v568 = vsel %vm512, %v562, %v543
        %v570 = vunpack.c.l.s4 1983009808
        %v571 = vunpack.c.0.s8 %v570
        %v572 = vperm.slane %v568, %v571
        %v573 = vrot.slane %v563, 4
        %v574 = vsel %vm512, %v573, %v561
        %v576 = vunpack.c.l.s4 1983009808
        %v577 = vunpack.c.0.s8 %v576
        %v578 = vperm.slane %v574, %v577
        %v579 = vsel %vm512, %v566, %v555
        %v581 = vunpack.c.l.s4 1983009808
        %v582 = vunpack.c.0.s8 %v581
        %v583 = vperm.slane %v579, %v582
        %v584 = vrot.slane %v567, 4
        %v585 = vsel %vm512, %v584, %v565
        %v587 = vunpack.c.l.s4 1983009808
        %v588 = vunpack.c.0.s8 %v587
        %v589 = vperm.slane %v585, %v588
        %v590 = vrot.slane %v578, 4
        %v591 = vsel %vm512, %v590, %v572
        %v592 = vrot.slane %v572, 4
        %v593 = vsel %vm512, %v578, %v592
        %v595 = vunpack.c.l.s4 1934713408
        %v596 = vunpack.c.0.s8 %v595
        %v597 = vperm.slane %v591, %v596
        %v599 = vunpack.c.l.s4 1934713408
        %v600 = vunpack.c.0.s8 %v599
        %v601 = vperm.slane %v593, %v600
        %v602 = vrot.slane %v589, 4
        %v603 = vsel %vm512, %v602, %v583
        %v604 = vrot.slane %v583, 4
        %v605 = vsel %vm512, %v589, %v604
        %v607 = vunpack.c.l.s4 1934713408
        %v608 = vunpack.c.0.s8 %v607
        %v609 = vperm.slane %v603, %v608
        %v611 = vunpack.c.l.s4 1934713408
        %v612 = vunpack.c.0.s8 %v611
        %v613 = vperm.slane %v605, %v612
        %v614 = vrot.slane %v609, 4
        %v615 = vsel %vm512, %v614, %v597
        %v616 = vrot.slane %v597, 4
        %v617 = vsel %vm512, %v609, %v616
        %v618 = vrot.slane %v613, 4
        %v619 = vsel %vm512, %v618, %v601
        %v620 = vrot.slane %v601, 4
        %v621 = vsel %vm512, %v613, %v620
        %623 = vrot.lane.b32.xlu0 %v447, 120
        %v624 = vpop.permute.xlu0 %623
        %626 = vrot.lane.b32.xlu0 %v447, 112
        %v627 = vpop.permute.xlu0 %626
        %629 = vrot.lane.b32.xlu0 %v447, 104
        %v630 = vpop.permute.xlu0 %629
        %v632 = vrot.slane %v627, 4
        %v633 = vsel %vm512, %v632, %v447
        %v634 = vrot.slane %v447, 4
        %v635 = vsel %vm512, %v627, %v634
        %v637 = vunpack.c.l.s4 1983009808
        %v638 = vunpack.c.0.s8 %v637
        %v639 = vperm.slane %v633, %v638
        %v641 = vunpack.c.l.s4 1983009808
        %v642 = vunpack.c.0.s8 %v641
        %v643 = vperm.slane %v635, %v642
        %v644 = vrot.slane %v630, 4
        %v645 = vsel %vm512, %v644, %v624
        %v646 = vrot.slane %v624, 4
        %v647 = vsel %vm512, %v630, %v646
        %v649 = vunpack.c.l.s4 1983009808
        %v650 = vunpack.c.0.s8 %v649
        %v651 = vperm.slane %v645, %v650
        %v653 = vunpack.c.l.s4 1983009808
        %v654 = vunpack.c.0.s8 %v653
        %v655 = vperm.slane %v647, %v654
        %v656 = vrot.slane %v651, 4
        %v657 = vsel %vm512, %v656, %v639
        %v658 = vrot.slane %v639, 4
        %v659 = vsel %vm512, %v651, %v658
        %v661 = vunpack.c.l.s4 1934713408
        %v662 = vunpack.c.0.s8 %v661
        %v663 = vperm.slane %v657, %v662
        %v665 = vunpack.c.l.s4 1934713408
        %v666 = vunpack.c.0.s8 %v665
        %v667 = vperm.slane %v659, %v666
        %v668 = vrot.slane %v655, 4
        %v669 = vsel %vm512, %v668, %v643
        %v670 = vrot.slane %v643, 4
        %v671 = vsel %vm512, %v655, %v670
        %v673 = vunpack.c.l.s4 1934713408
        %v674 = vunpack.c.0.s8 %v673
        %v675 = vperm.slane %v669, %v674
        %v677 = vunpack.c.l.s4 1934713408
        %v678 = vunpack.c.0.s8 %v677
        %v679 = vperm.slane %v671, %v678
        %v680 = vrot.slane %v663, 4
        %v681 = vsel %vm512, 0.0, %v680
        %v682 = vrot.slane %v667, 4
        %v683 = vsel %vm512, 0.0, %v682
        %v684 = vrot.slane %v675, 4
        %v685 = vsel %vm512, 0.0, %v684
        %v686 = vrot.slane %v679, 4
        %v687 = vsel %vm512, 0.0, %v686
        %v688 = vsel %vm512, %v682, %v663
        %v690 = vunpack.c.l.s4 1983009808
        %v691 = vunpack.c.0.s8 %v690
        %v692 = vperm.slane %v688, %v691
        %v693 = vrot.slane %v683, 4
        %v694 = vsel %vm512, %v693, %v681
        %v696 = vunpack.c.l.s4 1983009808
        %v697 = vunpack.c.0.s8 %v696
        %v698 = vperm.slane %v694, %v697
        %v699 = vsel %vm512, %v686, %v675
        %v701 = vunpack.c.l.s4 1983009808
        %v702 = vunpack.c.0.s8 %v701
        %v703 = vperm.slane %v699, %v702
        %v704 = vrot.slane %v687, 4
        %v705 = vsel %vm512, %v704, %v685
        %v707 = vunpack.c.l.s4 1983009808
        %v708 = vunpack.c.0.s8 %v707
        %v709 = vperm.slane %v705, %v708
        %v710 = vrot.slane %v698, 4
        %v711 = vsel %vm512, %v710, %v692
        %v712 = vrot.slane %v692, 4
        %v713 = vsel %vm512, %v698, %v712
        %v715 = vunpack.c.l.s4 1934713408
        %v716 = vunpack.c.0.s8 %v715
        %v717 = vperm.slane %v711, %v716
        %v719 = vunpack.c.l.s4 1934713408
        %v720 = vunpack.c.0.s8 %v719
        %v721 = vperm.slane %v713, %v720
        %v722 = vrot.slane %v709, 4
        %v723 = vsel %vm512, %v722, %v703
        %v724 = vrot.slane %v703, 4
        %v725 = vsel %vm512, %v709, %v724
        %v727 = vunpack.c.l.s4 1934713408
        %v728 = vunpack.c.0.s8 %v727
        %v729 = vperm.slane %v723, %v728
        %v731 = vunpack.c.l.s4 1934713408
        %v732 = vunpack.c.0.s8 %v731
        %v733 = vperm.slane %v725, %v732
        %v734 = vrot.slane %v729, 4
        %v735 = vsel %vm512, %v734, %v717
        %v736 = vrot.slane %v717, 4
        %v737 = vsel %vm512, %v729, %v736
        %v738 = vrot.slane %v733, 4
        %v739 = vsel %vm512, %v738, %v721
        %v740 = vrot.slane %v721, 4
        %v741 = vsel %vm512, %v733, %v740
        %743 = vrot.lane.b32.xlu0 %v471, 120
        %v744 = vpop.permute.xlu0 %743
        %746 = vrot.lane.b32.xlu0 %v471, 112
        %v747 = vpop.permute.xlu0 %746
        %749 = vrot.lane.b32.xlu0 %v471, 104
        %v750 = vpop.permute.xlu0 %749
        %v752 = vrot.slane %v747, 4
        %v753 = vsel %vm512, %v752, %v471
        %v754 = vrot.slane %v471, 4
        %v755 = vsel %vm512, %v747, %v754
        %v757 = vunpack.c.l.s4 1983009808
        %v758 = vunpack.c.0.s8 %v757
        %v759 = vperm.slane %v753, %v758
        %v761 = vunpack.c.l.s4 1983009808
        %v762 = vunpack.c.0.s8 %v761
        %v763 = vperm.slane %v755, %v762
        %v764 = vrot.slane %v750, 4
        %v765 = vsel %vm512, %v764, %v744
        %v766 = vrot.slane %v744, 4
        %v767 = vsel %vm512, %v750, %v766
        %v769 = vunpack.c.l.s4 1983009808
        %v770 = vunpack.c.0.s8 %v769
        %v771 = vperm.slane %v765, %v770
        %v773 = vunpack.c.l.s4 1983009808
        %v774 = vunpack.c.0.s8 %v773
        %v775 = vperm.slane %v767, %v774
        %v776 = vrot.slane %v771, 4
        %v777 = vsel %vm512, %v776, %v759
        %v778 = vrot.slane %v759, 4
        %v779 = vsel %vm512, %v771, %v778
        %v781 = vunpack.c.l.s4 1934713408
        %v782 = vunpack.c.0.s8 %v781
        %v783 = vperm.slane %v777, %v782
        %v785 = vunpack.c.l.s4 1934713408
        %v786 = vunpack.c.0.s8 %v785
        %v787 = vperm.slane %v779, %v786
        %v788 = vrot.slane %v775, 4
        %v789 = vsel %vm512, %v788, %v763
        %v790 = vrot.slane %v763, 4
        %v791 = vsel %vm512, %v775, %v790
        %v793 = vunpack.c.l.s4 1934713408
        %v794 = vunpack.c.0.s8 %v793
        %v795 = vperm.slane %v789, %v794
        %v797 = vunpack.c.l.s4 1934713408
        %v798 = vunpack.c.0.s8 %v797
        %v799 = vperm.slane %v791, %v798
        %v800 = vrot.slane %v783, 4
        %v801 = vsel %vm512, 0.0, %v800
        %v802 = vrot.slane %v787, 4
        %v803 = vsel %vm512, 0.0, %v802
        %v804 = vrot.slane %v795, 4
        %v805 = vsel %vm512, 0.0, %v804
        %v806 = vrot.slane %v799, 4
        %v807 = vsel %vm512, 0.0, %v806
        %v808 = vsel %vm512, %v802, %v783
        %v810 = vunpack.c.l.s4 1983009808
        %v811 = vunpack.c.0.s8 %v810
        %v812 = vperm.slane %v808, %v811
        %v813 = vrot.slane %v803, 4
        %v814 = vsel %vm512, %v813, %v801
        %v816 = vunpack.c.l.s4 1983009808
        %v817 = vunpack.c.0.s8 %v816
        %v818 = vperm.slane %v814, %v817
        %v819 = vsel %vm512, %v806, %v795
        %v821 = vunpack.c.l.s4 1983009808
        %v822 = vunpack.c.0.s8 %v821
        %v823 = vperm.slane %v819, %v822
        %v824 = vrot.slane %v807, 4
        %v825 = vsel %vm512, %v824, %v805
        %v827 = vunpack.c.l.s4 1983009808
        %v828 = vunpack.c.0.s8 %v827
        %v829 = vperm.slane %v825, %v828
        %v830 = vrot.slane %v818, 4
        %v831 = vsel %vm512, %v830, %v812
        %v832 = vrot.slane %v812, 4
        %v833 = vsel %vm512, %v818, %v832
        %v835 = vunpack.c.l.s4 1934713408
        %v836 = vunpack.c.0.s8 %v835
        %v837 = vperm.slane %v831, %v836
        %v839 = vunpack.c.l.s4 1934713408
        %v840 = vunpack.c.0.s8 %v839
        %v841 = vperm.slane %v833, %v840
        %v842 = vrot.slane %v829, 4
        %v843 = vsel %vm512, %v842, %v823
        %v844 = vrot.slane %v823, 4
        %v845 = vsel %vm512, %v829, %v844
        %v847 = vunpack.c.l.s4 1934713408
        %v848 = vunpack.c.0.s8 %v847
        %v849 = vperm.slane %v843, %v848
        %v851 = vunpack.c.l.s4 1934713408
        %v852 = vunpack.c.0.s8 %v851
        %v853 = vperm.slane %v845, %v852
        %v854 = vrot.slane %v849, 4
        %v855 = vsel %vm512, %v854, %v837
        %v856 = vrot.slane %v837, 4
        %v857 = vsel %vm512, %v849, %v856
        %v858 = vrot.slane %v853, 4
        %v859 = vsel %vm512, %v858, %v841
        %v860 = vrot.slane %v841, 4
        %v861 = vsel %vm512, %v853, %v860
        %v862 = vlaneseq
        %v863 = vshrl.u32 %v862, 7
        %v864 = vstv %s418
        %v865 = vadd.s32 %v863, %v864
        %v866 = vlaneseq
        %v867 = vand.u32 %v866, 127
        %vm868 = vcmp.gt.s32.totalorder %v867, %v865
        %vm869 = vcmp.ge.s32.totalorder %v867, 8
        %vm870 = vmor %vm868, %vm869
        %v871 = vsel %vm870, -1e+30, 0.0
        %vm872 = vcmask 64512
        %v874 = vsel %vm872, %v615, 0
        %v877 = vsel %vm872, %v735, 0
        %879 = vmatpush.xpose.msra.mxu0 0.0
        %880 = vmatpush.xpose.msra.mxu0 0.0
        %881 = vmatpush.xpose.msra.mxu0 0.0
        %882 = vmatpush.xpose.msra.mxu0 0.0
        %883 = vmatpush.xpose.msra.mxu0 0.0
        %884 = vmatpush.xpose.msra.mxu0 0.0
        %885 = vmatpush.xpose.msra.mxu0 0.0
        %886 = vmatpush.xpose.msra.mxu0 0.0
        %887 = vmatpush.xpose.msra.mxu0 0.0
        %888 = vmatpush.xpose.msra.mxu0 0.0
        %889 = vmatpush.xpose.msra.mxu0 0.0
        %890 = vmatpush.xpose.msra.mxu0 0.0
        %891 = vmatpush.xpose.msra.mxu0 0.0
        %892 = vmatpush.xpose.msra.mxu0 0.0
        %893 = vmatpush.xpose.msra.mxu0 0.0
        %894 = vmatpush.xpose.msra.mxu0 %v877
        %895 = vmatmul.f32.gmra.mxu0 %v874
        %v896 = vpop.f32.mrf.mxu0
        %v897 = vadd.f32 %v871, %v896
        %898 = vdwg.mxu0
        %v900 = vsel %vm872, %v617, 0
        %v903 = vsel %vm872, %v737, 0
        %905 = vmatpush.xpose.msra.mxu0 0.0
        %906 = vmatpush.xpose.msra.mxu0 0.0
        %907 = vmatpush.xpose.msra.mxu0 0.0
        %908 = vmatpush.xpose.msra.mxu0 0.0
        %909 = vmatpush.xpose.msra.mxu0 0.0
        %910 = vmatpush.xpose.msra.mxu0 0.0
        %911 = vmatpush.xpose.msra.mxu0 0.0
        %912 = vmatpush.xpose.msra.mxu0 0.0
        %913 = vmatpush.xpose.msra.mxu0 0.0
        %914 = vmatpush.xpose.msra.mxu0 0.0
        %915 = vmatpush.xpose.msra.mxu0 0.0
        %916 = vmatpush.xpose.msra.mxu0 0.0
        %917 = vmatpush.xpose.msra.mxu0 0.0
        %918 = vmatpush.xpose.msra.mxu0 0.0
        %919 = vmatpush.xpose.msra.mxu0 0.0
        %920 = vmatpush.xpose.msra.mxu0 %v903
        %921 = vmatmul.f32.gmra.mxu0 %v900
        %v922 = vpop.f32.mrf.mxu0
        %v923 = vadd.f32 %v871, %v922
        %924 = vdwg.mxu0
        %v926 = vsel %vm872, %v619, 0
        %v929 = vsel %vm872, %v739, 0
        %931 = vmatpush.xpose.msra.mxu0 0.0
        %932 = vmatpush.xpose.msra.mxu0 0.0
        %933 = vmatpush.xpose.msra.mxu0 0.0
        %934 = vmatpush.xpose.msra.mxu0 0.0
        %935 = vmatpush.xpose.msra.mxu0 0.0
        %936 = vmatpush.xpose.msra.mxu0 0.0
        %937 = vmatpush.xpose.msra.mxu0 0.0
        %938 = vmatpush.xpose.msra.mxu0 0.0
        %939 = vmatpush.xpose.msra.mxu0 0.0
        %940 = vmatpush.xpose.msra.mxu0 0.0
        %941 = vmatpush.xpose.msra.mxu0 0.0
        %942 = vmatpush.xpose.msra.mxu0 0.0
        %943 = vmatpush.xpose.msra.mxu0 0.0
        %944 = vmatpush.xpose.msra.mxu0 0.0
        %945 = vmatpush.xpose.msra.mxu0 0.0
        %946 = vmatpush.xpose.msra.mxu0 %v929
        %947 = vmatmul.f32.gmra.mxu0 %v926
        %v948 = vpop.f32.mrf.mxu0
        %v949 = vadd.f32 %v871, %v948
        %950 = vdwg.mxu0
        %v952 = vsel %vm872, %v621, 0
        %v955 = vsel %vm872, %v741, 0
        %957 = vmatpush.xpose.msra.mxu0 0.0
        %958 = vmatpush.xpose.msra.mxu0 0.0
        %959 = vmatpush.xpose.msra.mxu0 0.0
        %960 = vmatpush.xpose.msra.mxu0 0.0
        %961 = vmatpush.xpose.msra.mxu0 0.0
        %962 = vmatpush.xpose.msra.mxu0 0.0
        %963 = vmatpush.xpose.msra.mxu0 0.0
        %964 = vmatpush.xpose.msra.mxu0 0.0
        %965 = vmatpush.xpose.msra.mxu0 0.0
        %966 = vmatpush.xpose.msra.mxu0 0.0
        %967 = vmatpush.xpose.msra.mxu0 0.0
        %968 = vmatpush.xpose.msra.mxu0 0.0
        %969 = vmatpush.xpose.msra.mxu0 0.0
        %970 = vmatpush.xpose.msra.mxu0 0.0
        %971 = vmatpush.xpose.msra.mxu0 0.0
        %972 = vmatpush.xpose.msra.mxu0 %v955
        %973 = vmatmul.f32.gmra.mxu0 %v952
        %v974 = vpop.f32.mrf.mxu0
        %v975 = vadd.f32 %v871, %v974
        %976 = vdwg.mxu0
        %v977 = vsel %vm872, %v897, -inf
        %978 = vmax.xlane.f32.xlu0 %v977
        %v979 = vpop.xlane.xlu0 %978
        %v980 = vsel %vm872, %v923, -inf
        %981 = vmax.xlane.f32.xlu0 %v980
        %v982 = vpop.xlane.xlu0 %981
        %v983 = vsel %vm872, %v949, -inf
        %984 = vmax.xlane.f32.xlu0 %v983
        %v985 = vpop.xlane.xlu0 %984
        %v986 = vsel %vm872, %v975, -inf
        %987 = vmax.xlane.f32.xlu0 %v986
        %v988 = vpop.xlane.xlu0 %987
        %v989 = vsub.f32 %v897, %v979
        %v990 = vsub.f32 %v923, %v982
        %v991 = vsub.f32 %v949, %v985
        %v992 = vsub.f32 %v975, %v988
        %v993 = vmul.f32 %v989, 1.442695
        %v994 = vpow.pop %v993
        %v995 = vmul.f32 %v990, 1.442695
        %v996 = vpow.pop %v995
        %v997 = vmul.f32 %v991, 1.442695
        %v998 = vpow.pop %v997
        %v999 = vmul.f32 %v992, 1.442695
        %v1000 = vpow.pop %v999
        %v1001 = vsel %vm872, %v994, 0.0
        %1002 = vadd.xlane.f32.xlu0 %v1001
        %v1003 = vpop.xlane.xlu0 %1002
        %v1004 = vsel %vm872, %v996, 0.0
        %1005 = vadd.xlane.f32.xlu0 %v1004
        %v1006 = vpop.xlane.xlu0 %1005
        %v1007 = vsel %vm872, %v998, 0.0
        %1008 = vadd.xlane.f32.xlu0 %v1007
        %v1009 = vpop.xlane.xlu0 %1008
        %v1010 = vsel %vm872, %v1000, 0.0
        %1011 = vadd.xlane.f32.xlu0 %v1010
        %v1012 = vpop.xlane.xlu0 %1011
        %v1013 = vrcp.pop %v1003
        %v1014 = vmul.f32 %v1003, %v1013
        %v1015 = vsub.f32 1.0, %v1014
        %v1016 = vmul.f32 %v1013, %v1015
        %v1017 = vadd.f32 %v1013, %v1016
        %vm1018 = vweird.f32 %v1003
        %vm1019 = vweird.f32 %v1013
        %vm1020 = vmor %vm1018, %vm1019
        %v1021 = vsel %vm1020, %v1013, %v1017
        %v1022 = vand.u32 2147483647, %v1003
        %vm1023 = vcmp.eq.f32.partialorder %v1022, 8.507059e+37
        %v1024 = vand.u32 %v1003, 2147483648
        %v1025 = vor.u32 1.1754944e-38, %v1024
        %v1026 = vsel %vm1023, %v1025, %v1021
        %v1027 = vrcp.pop %v1006
        %v1028 = vmul.f32 %v1006, %v1027
        %v1029 = vsub.f32 1.0, %v1028
        %v1030 = vmul.f32 %v1027, %v1029
        %v1031 = vadd.f32 %v1027, %v1030
        %vm1032 = vweird.f32 %v1006
        %vm1033 = vweird.f32 %v1027
        %vm1034 = vmor %vm1032, %vm1033
        %v1035 = vsel %vm1034, %v1027, %v1031
        %v1036 = vand.u32 2147483647, %v1006
        %vm1037 = vcmp.eq.f32.partialorder %v1036, 8.507059e+37
        %v1038 = vand.u32 %v1006, 2147483648
        %v1039 = vor.u32 1.1754944e-38, %v1038
        %v1040 = vsel %vm1037, %v1039, %v1035
        %v1041 = vrcp.pop %v1009
        %v1042 = vmul.f32 %v1009, %v1041
        %v1043 = vsub.f32 1.0, %v1042
        %v1044 = vmul.f32 %v1041, %v1043
        %v1045 = vadd.f32 %v1041, %v1044
        %vm1046 = vweird.f32 %v1009
        %vm1047 = vweird.f32 %v1041
        %vm1048 = vmor %vm1046, %vm1047
        %v1049 = vsel %vm1048, %v1041, %v1045
        %v1050 = vand.u32 2147483647, %v1009
        %vm1051 = vcmp.eq.f32.partialorder %v1050, 8.507059e+37
        %v1052 = vand.u32 %v1009, 2147483648
        %v1053 = vor.u32 1.1754944e-38, %v1052
        %v1054 = vsel %vm1051, %v1053, %v1049
        %v1055 = vrcp.pop %v1012
        %v1056 = vmul.f32 %v1012, %v1055
        %v1057 = vsub.f32 1.0, %v1056
        %v1058 = vmul.f32 %v1055, %v1057
        %v1059 = vadd.f32 %v1055, %v1058
        %vm1060 = vweird.f32 %v1012
        %vm1061 = vweird.f32 %v1055
        %vm1062 = vmor %vm1060, %vm1061
        %v1063 = vsel %vm1062, %v1055, %v1059
        %v1064 = vand.u32 2147483647, %v1012
        %vm1065 = vcmp.eq.f32.partialorder %v1064, 8.507059e+37
        %v1066 = vand.u32 %v1012, 2147483648
        %v1067 = vor.u32 1.1754944e-38, %v1066
        %v1068 = vsel %vm1065, %v1067, %v1063
        %v1069 = vmul.f32 %v994, %v1026
        %v1070 = vmul.f32 %v996, %v1040
        %v1071 = vmul.f32 %v998, %v1054
        %v1072 = vmul.f32 %v1000, %v1068
        %v1074 = vsel %vm872, %v1069, 0
        %1076 = vmatpush.msra.mxu0 0.0
        %1077 = vmatpush.msra.mxu0 0.0
        %1078 = vmatpush.msra.mxu0 0.0
        %1079 = vmatpush.msra.mxu0 0.0
        %1080 = vmatpush.msra.mxu0 0.0
        %1081 = vmatpush.msra.mxu0 0.0
        %1082 = vmatpush.msra.mxu0 0.0
        %1083 = vmatpush.msra.mxu0 0.0
        %1084 = vmatpush.msra.mxu0 0.0
        %1085 = vmatpush.msra.mxu0 0.0
        %1086 = vmatpush.msra.mxu0 0.0
        %1087 = vmatpush.msra.mxu0 0.0
        %1088 = vmatpush.msra.mxu0 0.0
        %1089 = vmatpush.msra.mxu0 0.0
        %1090 = vmatpush.msra.mxu0 0.0
        %1091 = vmatpush.msra.mxu0 %v855
        %1092 = vmatmul.f32.gmra.mxu0 %v1074
        %v1093 = vpop.f32.mrf.mxu0
        %v1094 = vadd.f32 0.0, %v1093
        %1095 = vdwg.mxu0
        %v1097 = vsel %vm872, %v1070, 0
        %1099 = vmatpush.msra.mxu0 0.0
        %1100 = vmatpush.msra.mxu0 0.0
        %1101 = vmatpush.msra.mxu0 0.0
        %1102 = vmatpush.msra.mxu0 0.0
        %1103 = vmatpush.msra.mxu0 0.0
        %1104 = vmatpush.msra.mxu0 0.0
        %1105 = vmatpush.msra.mxu0 0.0
        %1106 = vmatpush.msra.mxu0 0.0
        %1107 = vmatpush.msra.mxu0 0.0
        %1108 = vmatpush.msra.mxu0 0.0
        %1109 = vmatpush.msra.mxu0 0.0
        %1110 = vmatpush.msra.mxu0 0.0
        %1111 = vmatpush.msra.mxu0 0.0
        %1112 = vmatpush.msra.mxu0 0.0
        %1113 = vmatpush.msra.mxu0 0.0
        %1114 = vmatpush.msra.mxu0 %v857
        %1115 = vmatmul.f32.gmra.mxu0 %v1097
        %v1116 = vpop.f32.mrf.mxu0
        %v1117 = vadd.f32 0.0, %v1116
        %1118 = vdwg.mxu0
        %v1120 = vsel %vm872, %v1071, 0
        %1122 = vmatpush.msra.mxu0 0.0
        %1123 = vmatpush.msra.mxu0 0.0
        %1124 = vmatpush.msra.mxu0 0.0
        %1125 = vmatpush.msra.mxu0 0.0
        %1126 = vmatpush.msra.mxu0 0.0
        %1127 = vmatpush.msra.mxu0 0.0
        %1128 = vmatpush.msra.mxu0 0.0
        %1129 = vmatpush.msra.mxu0 0.0
        %1130 = vmatpush.msra.mxu0 0.0
        %1131 = vmatpush.msra.mxu0 0.0
        %1132 = vmatpush.msra.mxu0 0.0
        %1133 = vmatpush.msra.mxu0 0.0
        %1134 = vmatpush.msra.mxu0 0.0
        %1135 = vmatpush.msra.mxu0 0.0
        %1136 = vmatpush.msra.mxu0 0.0
        %1137 = vmatpush.msra.mxu0 %v859
        %1138 = vmatmul.f32.gmra.mxu0 %v1120
        %v1139 = vpop.f32.mrf.mxu0
        %v1140 = vadd.f32 0.0, %v1139
        %1141 = vdwg.mxu0
        %v1143 = vsel %vm872, %v1072, 0
        %1145 = vmatpush.msra.mxu0 0.0
        %1146 = vmatpush.msra.mxu0 0.0
        %1147 = vmatpush.msra.mxu0 0.0
        %1148 = vmatpush.msra.mxu0 0.0
        %1149 = vmatpush.msra.mxu0 0.0
        %1150 = vmatpush.msra.mxu0 0.0
        %1151 = vmatpush.msra.mxu0 0.0
        %1152 = vmatpush.msra.mxu0 0.0
        %1153 = vmatpush.msra.mxu0 0.0
        %1154 = vmatpush.msra.mxu0 0.0
        %1155 = vmatpush.msra.mxu0 0.0
        %1156 = vmatpush.msra.mxu0 0.0
        %1157 = vmatpush.msra.mxu0 0.0
        %1158 = vmatpush.msra.mxu0 0.0
        %1159 = vmatpush.msra.mxu0 0.0
        %1160 = vmatpush.msra.mxu0 %v861
        %1161 = vmatmul.f32.gmra.mxu0 %v1143
        %v1162 = vpop.f32.mrf.mxu0
        %v1163 = vadd.f32 0.0, %v1162
        %1164 = vdwg.mxu0
        %v1165 = vrot.slane %v1140, 4
        %v1166 = vsel %vm512, %v1165, %v1094
        %v1167 = vrot.slane %v1094, 4
        %v1168 = vsel %vm512, %v1140, %v1167
        %v1170 = vunpack.c.l.s4 1983009808
        %v1171 = vunpack.c.0.s8 %v1170
        %v1172 = vperm.slane %v1166, %v1171
        %v1174 = vunpack.c.l.s4 1983009808
        %v1175 = vunpack.c.0.s8 %v1174
        %v1176 = vperm.slane %v1168, %v1175
        %v1177 = vrot.slane %v1163, 4
        %v1178 = vsel %vm512, %v1177, %v1117
        %v1179 = vrot.slane %v1117, 4
        %v1180 = vsel %vm512, %v1163, %v1179
        %v1182 = vunpack.c.l.s4 1983009808
        %v1183 = vunpack.c.0.s8 %v1182
        %v1184 = vperm.slane %v1178, %v1183
        %v1186 = vunpack.c.l.s4 1983009808
        %v1187 = vunpack.c.0.s8 %v1186
        %v1188 = vperm.slane %v1180, %v1187
        %v1189 = vrot.slane %v1184, 4
        %v1190 = vsel %vm512, %v1189, %v1172
        %v1191 = vrot.slane %v1172, 4
        %v1192 = vsel %vm512, %v1184, %v1191
        %v1194 = vunpack.c.l.s4 1934713408
        %v1195 = vunpack.c.0.s8 %v1194
        %v1196 = vperm.slane %v1190, %v1195
        %v1198 = vunpack.c.l.s4 1934713408
        %v1199 = vunpack.c.0.s8 %v1198
        %v1200 = vperm.slane %v1192, %v1199
        %v1201 = vrot.slane %v1188, 4
        %v1202 = vsel %vm512, %v1201, %v1176
        %v1203 = vrot.slane %v1176, 4
        %v1204 = vsel %vm512, %v1188, %v1203
        %v1206 = vunpack.c.l.s4 1934713408
        %v1207 = vunpack.c.0.s8 %v1206
        %v1208 = vperm.slane %v1202, %v1207
        %v1210 = vunpack.c.l.s4 1934713408
        %v1211 = vunpack.c.0.s8 %v1210
        %v1212 = vperm.slane %v1204, %v1211
        %v1213 = vrot.slane %v1196, 4
        %v1214 = vsel %vm512, 0.0, %v1213
        %v1215 = vrot.slane %v1200, 4
        %v1216 = vsel %vm512, 0.0, %v1215
        %v1217 = vrot.slane %v1208, 4
        %v1218 = vsel %vm512, 0.0, %v1217
        %v1219 = vrot.slane %v1212, 4
        %v1220 = vsel %vm512, 0.0, %v1219
        %v1221 = vsel %vm512, %v1215, %v1196
        %v1223 = vunpack.c.l.s4 1983009808
        %v1224 = vunpack.c.0.s8 %v1223
        %v1225 = vperm.slane %v1221, %v1224
        %v1226 = vrot.slane %v1216, 4
        %v1227 = vsel %vm512, %v1226, %v1214
        %v1229 = vunpack.c.l.s4 1983009808
        %v1230 = vunpack.c.0.s8 %v1229
        %v1231 = vperm.slane %v1227, %v1230
        %v1232 = vsel %vm512, %v1219, %v1208
        %v1234 = vunpack.c.l.s4 1983009808
        %v1235 = vunpack.c.0.s8 %v1234
        %v1236 = vperm.slane %v1232, %v1235
        %v1237 = vrot.slane %v1220, 4
        %v1238 = vsel %vm512, %v1237, %v1218
        %v1240 = vunpack.c.l.s4 1983009808
        %v1241 = vunpack.c.0.s8 %v1240
        %v1242 = vperm.slane %v1238, %v1241
        %v1243 = vrot.slane %v1231, 4
        %v1244 = vsel %vm512, %v1243, %v1225
        %v1245 = vrot.slane %v1225, 4
        %v1246 = vsel %vm512, %v1231, %v1245
        %v1248 = vunpack.c.l.s4 1934713408
        %v1249 = vunpack.c.0.s8 %v1248
        %v1250 = vperm.slane %v1244, %v1249
        %v1252 = vunpack.c.l.s4 1934713408
        %v1253 = vunpack.c.0.s8 %v1252
        %v1254 = vperm.slane %v1246, %v1253
        %v1255 = vrot.slane %v1242, 4
        %v1256 = vsel %vm512, %v1255, %v1236
        %v1257 = vrot.slane %v1236, 4
        %v1258 = vsel %vm512, %v1242, %v1257
        %v1260 = vunpack.c.l.s4 1934713408
        %v1261 = vunpack.c.0.s8 %v1260
        %v1262 = vperm.slane %v1256, %v1261
        %v1264 = vunpack.c.l.s4 1934713408
        %v1265 = vunpack.c.0.s8 %v1264
        %v1266 = vperm.slane %v1258, %v1265
        %v1267 = vrot.slane %v1262, 4
        %v1268 = vsel %vm512, %v1267, %v1250
        %v1269 = vrot.slane %v1250, 4
        %v1270 = vsel %vm512, %v1262, %v1269
        %v1271 = vrot.slane %v1266, 4
        %v1272 = vsel %vm512, %v1271, %v1254
        %v1273 = vrot.slane %v1254, 4
        %v1274 = vsel %vm512, %v1266, %v1273
        %1276 = vrot.lane.b32.xlu0 %v1270, 8
        %v1277 = vpop.permute.xlu0 %1276
        %1280 = vrot.lane.b32.xlu0 %v1272, 16
        %v1281 = vpop.permute.xlu0 %1280
        %1284 = vrot.lane.b32.xlu0 %v1274, 24
        %v1285 = vpop.permute.xlu0 %1284
        %v1287 = vsel %vm872, %v1268, %v1277
        %vm1288 = vcmask 130048
        %v1289 = vsel %vm1288, %v1287, %v1281
        %vm1290 = vcmask 195584
        %v1291 = vsel %vm1290, %v1289, %v1285
        %v1292 = vld [vmem:[#allocation11] sm:$0xff]
        %v1293 = vld [vmem:[#allocation11 + $0x8] sm:$0xff]
        %v1294 = vld [vmem:[#allocation11 + $0x10] sm:$0xff]
        %v1295 = vld [vmem:[#allocation11 + $0x18] sm:$0xff]
        %v1296 = vld [vmem:[%s6] sm:$0x1]
        %v1298 = vperm.slane %v1296, 0
        %v1301 = vsel %vm425, %v1291, 0
        %1303 = vmatpush.msra.mxu0 0.0
        %1304 = vmatpush.msra.mxu0 0.0
        %1305 = vmatpush.msra.mxu0 0.0
        %1306 = vmatpush.msra.mxu0 0.0
        %1307 = vmatpush.msra.mxu0 0.0
        %1308 = vmatpush.msra.mxu0 0.0
        %1309 = vmatpush.msra.mxu0 0.0
        %1310 = vmatpush.msra.mxu0 0.0
        %1311 = vmatpush.msra.mxu0 0.0
        %1312 = vmatpush.msra.mxu0 0.0
        %1313 = vmatpush.msra.mxu0 0.0
        %1314 = vmatpush.msra.mxu0 0.0
        %1315 = vmatpush.msra.mxu0 %v1295
        %1316 = vmatpush.msra.mxu0 %v1294
        %1317 = vmatpush.msra.mxu0 %v1293
        %1318 = vmatpush.msra.mxu0 %v1292
        %1319 = vmatmul.f32.gmra.mxu0 %v1301
        %v1320 = vpop.f32.mrf.mxu0
        %v1321 = vadd.f32 %v1298, %v1320
        %1322 = vdwg.mxu0
        %1323 = vst.msk [vmem:[%s417] sm:$0xff] %vm425, %v1321
        %s1324 = sand.u32 %s210, 1
        %s1325 = scalar_lea.sflag [#allocation4], %s1324
        %s1326 = sand.u32 %s210, 1
        %s1327 = smul.addr %s1326, 8
        %s1328 = scalar_lea.vmem [#allocation13], %s1327
        // Predicated region
        $region73: #{tpu_custom_call.1} parent=47 // pred_check
          %p1329 = pneg %p220
        $region74: #{tpu_custom_call.1} parent=47 // pred_check_branch
          %1331 = sbr.rel (%p1329) target = $region76
        $region75: #{tpu_custom_call.1} parent=47 // pred_region
          %1333 = vsyncadd %s1325, 0
          %s1334 = sadd.s32 %s34, %s33
          %s1335 = smul.addr %s1334, 8
          %s1336 = scalar_lea.hbm %s7, %s1335
          %s1338 = sshll.u32 %s1328, 4
          %s1339 = int_to_ptr.vmem [resolvable:$true] %s1338
          %s1340 = sshll.u32 %s1336, 4
          %s1341 = int_to_ptr.hbm [resolvable:$true] %s1340
          %1343 = dma.vmem_to_hbm [thread:$0]  %s1339, 128, %s1341, %s1325
        $region76: #{tpu_custom_call.1} parent=47 // pred_fallthru
          _
      $region48: #{tpu_custom_call.1} parent=5 // pred_fallthru
        _
      %p1344 = scmp.le.s32.totalorder 2, %s24
      // Predicated region
      $region77: #{tpu_custom_call.1} parent=5 // pred_check
        %p1345 = pneg %p1344
      $region78: #{tpu_custom_call.1} parent=5 // pred_check_branch
        %1347 = sbr.rel (%p1345) target = $region80
      $region79: #{tpu_custom_call.1} parent=5 // pred_region
        %s1348 = ssub.s32 %s24, 2
        // Predicated region
        $region81: #{tpu_custom_call.1} parent=79 // pred_check
          %p1349 = pneg %p226
        $region82: #{tpu_custom_call.1} parent=79 // pred_check_branch
          %1351 = sbr.rel (%p1349) target = $region84
        $region83: #{tpu_custom_call.1} parent=79 // pred_region
          %s1352 = sand.u32 %s211, 1
          %s1353 = scalar_lea.sflag [#allocation4], %s1352
          %s1354 = sand.u32 %s211, 1
          %s1355 = smul.addr %s1354, 8
          %s1356 = scalar_lea.vmem [#allocation13], %s1355
          %1358 = dma.done %s1353, 128
        $region84: #{tpu_custom_call.1} parent=79 // pred_fallthru
          _
      $region80: #{tpu_custom_call.1} parent=5 // pred_fallthru
        _
    $region6: #{tpu_custom_call.1} parent=1 // loop_footer
      %s28 = sadd.s32 1, %s24
    $region7: #{tpu_custom_call.1} parent=1 // loop_footer_branch
      %23 = sbr.rel target = $region3
    $region8: #{tpu_custom_call.1} parent=1 // loop_exit
      _
    %1359 = vsyncpa [#allocation3], 1
    %s1360 = scalar_lea.sflag [#allocation3], 1
    %1361 = vsyncpa %s1360, 1
    %1362 = vsyncpa [#allocation6], 1
    %s1363 = scalar_lea.sflag [#allocation6], 1
    %1364 = vsyncpa %s1363, 1
    %1365 = vsyncpa [#allocation9], 1
    %1366 = vsyncpa [#allocation12], 1
    %1367 = vsyncpa [#allocation4], 1
    %s1368 = scalar_lea.sflag [#allocation4], 1
    %1369 = vsyncpa %s1368, 1

// kernel: tpu_custom_call.1
$region0: #{tpu_custom_call.1}
  #allocation0 [shape = 'u32[]', space=smem, size = 0x4, offset = 0x4, fixed_abs, tag = 'smem constant byte address 0x4 - core index']
  #allocation1 [shape = 'u32[72,128]{1,0:T(1,128)}', space=vmem, size = 0x9000, scoped, tag = 'internal scratch']
  %s0 = inlined_call_operand.hbm [shape: f32[2,8,32], index: 0, kind: input, shape index: {}]
  %s1 = inlined_call_operand.hbm [shape: f32[2,8,32], index: 1, kind: input, shape index: {}]
  %s2 = inlined_call_operand.hbm [shape: f32[32,32], index: 2, kind: input, shape index: {}]
  %s3 = inlined_call_operand.hbm [shape: f32[32,32], index: 3, kind: input, shape index: {}]
  %s4 = inlined_call_operand.hbm [shape: f32[32,32], index: 4, kind: input, shape index: {}]
  %s5 = inlined_call_operand.hbm [shape: f32[32,32], index: 5, kind: input, shape index: {}]
  %s6 = inlined_call_operand.vmem [shape: f32[1,32], index: 6, kind: input, shape index: {}]
  %s7 = inlined_call_operand.hbm [shape: f32[2,8,32], index: 7, kind: output, shape index: {}]
  %s8 = sld [smem:[#allocation0]]
  $region85: #{tpu_custom_call.1} parent=0
    _
  %s10 = ssub.s32 1, %s8
  %s11 = scalar_select 0, %s10, %s8
  $region1: #{tpu_custom_call.1} parent=0
    #allocation2 [shape = 'u8[8192]{0}', space=vmem, size = 0x2000, scoped, tag = 'input window, operand 0']
    #allocation3 [shape = 's32[2]{0}', space=sflag, size = 0x8, scoped, tag = 'scoped memory for tpu_custom_call.1']
    #allocation4 [shape = 's32[2]{0}', space=sflag, size = 0x8, scoped, tag = 'scoped memory for tpu_custom_call.1']
    #allocation5 [shape = 'u8[8192]{0}', space=vmem, size = 0x2000, scoped, tag = 'input window, operand 1']
    #allocation6 [shape = 's32[2]{0}', space=sflag, size = 0x8, scoped, tag = 'scoped memory for tpu_custom_call.1']
    #allocation7 [shape = 'u8[16384]{0}', space=vmem, size = 0x4000, scoped, tag = 'input window, operand 2, single buffered']
    #allocation8 [shape = 'u8[16384]{0}', space=vmem, size = 0x4000, scoped, tag = 'input window, operand 3, single buffered']
    #allocation9 [shape = 's32[1]{0}', space=sflag, size = 0x4, scoped, tag = 'scoped memory for tpu_custom_call.1']
    #allocation10 [shape = 'u8[16384]{0}', space=vmem, size = 0x4000, scoped, tag = 'input window, operand 4, single buffered']
    #allocation11 [shape = 'u8[16384]{0}', space=vmem, size = 0x4000, scoped, tag = 'input window, operand 5, single buffered']
    #allocation12 [shape = 's32[1]{0}', space=sflag, size = 0x4, scoped, tag = 'scoped memory for tpu_custom_call.1']
    #allocation13 [shape = 'u8[8192]{0}', space=vmem, size = 0x2000, scoped, tag = 'output window, operand 0']
    %12 = vsyncpa [#allocation3], 0
    %s13 = scalar_lea.sflag [#allocation3], 1
    %14 = vsyncpa %s13, 0
    %15 = vsyncpa [#allocation6], 0
    %s16 = scalar_lea.sflag [#allocation6], 1
    %17 = vsyncpa %s16, 0
    %18 = vsyncpa [#allocation9], 0
    %19 = vsyncpa [#allocation12], 0
    %20 = vsyncpa [#allocation4], 0
    %s21 = scalar_lea.sflag [#allocation4], 1
    %22 = vsyncpa %s21, 0
    loop: start=0, step=1, limit=4
    $region2: #{tpu_custom_call.1} parent=1 // loop_pre_header
      _
    $region3: #{tpu_custom_call.1} parent=1 // loop_header
      %s24 = sphi 0, %s28
      %p25 = scmp.ge.s32.totalorder %s24, 4
      %s31 = sphi 0, %s43
      %s32 = sphi 0, %s39
      %s33 = sphi 0, %s31
      %s34 = sphi 0, %s32
      %s35 = sphi 0, %s33
      %s36 = sphi 0, %s34
      %s46 = sphi 0, %s48
      %s49 = sphi 0, %s46
      %s50 = sphi 0, %s49
      %s66 = sphi 0, %s50
      %s74 = sphi 0, %s76
      %s77 = sphi 0, %s74
      %s78 = sphi 0, %s77
      %s94 = sphi 0, %s78
      %s98 = sphi 0, %s98
      %s100 = sphi 0, %s98
      %s101 = sphi 0, %s100
      %s115 = sphi 0, %s101
      %s119 = sphi 0, %s119
      %s121 = sphi 0, %s119
      %s122 = sphi 0, %s121
      %s136 = sphi 0, %s122
      %s140 = sphi 0, %s140
      %s142 = sphi 0, %s140
      %s143 = sphi 0, %s142
      %s157 = sphi 0, %s143
      %s161 = sphi 0, %s161
      %s163 = sphi 0, %s161
      %s164 = sphi 0, %s163
      %s178 = sphi 0, %s164
      %s182 = sphi 0, %s182
      %s184 = sphi 0, %s182
      %s185 = sphi 0, %s184
      %s199 = sphi 0, %s185
      %s207 = sphi 0, %s209
      %s210 = sphi 0, %s207
      %s211 = sphi 0, %s210
      %s227 = sphi 0, %s211
    $region4: #{tpu_custom_call.1} parent=1 // loop_header_branch
      %27 = sbr.rel (%p25) target = $region8
    $region5: #{tpu_custom_call.1} parent=1 // loop_body
      %s29 = ssub.s32 %s24, 1
      %s30 = ssub.s32 %s24, 2
      %s37 = sadd.s32 1, %s32
      %p38 = scmp.ge.s32.totalorder %s37, 1
      %s39 = scalar_select %p38, 0, %s37
      %s40 = sadd.s32 1, %s31
      %s41 = scalar_select %p38, %s40, %s31
      %p42 = scmp.ge.s32.totalorder %s41, 2
      %s43 = scalar_select %p42, 0, %s41
      %s44 = ssub.s32 %s31, %s43
      %p45 = scmp.eq.s32.totalorder %s44, 0
      %s47 = sadd.s32 %s46, 1
      %s48 = scalar_select %p45, %s46, %s47
      %p51 = pneg %p45
      %p52 = scmp.eq.s32.totalorder %s24, 1
      %p53 = por %p51, %p52
      %p54 = scmp.ne.s32.totalorder %s46, %s49
      %p55 = scmp.eq.s32.totalorder %s24, 0
      %p56 = por %p54, %p55
      %p57 = scmp.ne.s32.totalorder %s46, %s49
      %p58 = scmp.eq.s32.totalorder %s29, 1
      %p59 = por %p57, %p58
      %p60 = scmp.ne.s32.totalorder %s49, %s50
      %p61 = scmp.eq.s32.totalorder %s29, 0
      %p62 = por %p60, %p61
      %p63 = scmp.ne.s32.totalorder %s49, %s50
      %p64 = scmp.eq.s32.totalorder %s30, 1
      %p65 = por %p63, %p64
      %p67 = scmp.ne.s32.totalorder %s50, %s66
      %p68 = scmp.eq.s32.totalorder %s30, 0
      %p69 = por %p67, %p68
      %s70 = ssub.s32 %s31, %s43
      %s71 = ssub.s32 %s32, %s39
      %s72 = sor.u32 %s70, %s71
      %p73 = scmp.eq.s32.totalorder %s72, 0
      %s75 = sadd.s32 %s74, 1
      %s76 = scalar_select %p73, %s74, %s75
      %p79 = pneg %p73
      %p80 = scmp.eq.s32.totalorder %s24, 1
      %p81 = por %p79, %p80
      %p82 = scmp.ne.s32.totalorder %s74, %s77
      %p83 = scmp.eq.s32.totalorder %s24, 0
      %p84 = por %p82, %p83
      %p85 = scmp.ne.s32.totalorder %s74, %s77
      %p86 = scmp.eq.s32.totalorder %s29, 1
      %p87 = por %p85, %p86
      %p88 = scmp.ne.s32.totalorder %s77, %s78
      %p89 = scmp.eq.s32.totalorder %s29, 0
      %p90 = por %p88, %p89
      %p91 = scmp.ne.s32.totalorder %s77, %s78
      %p92 = scmp.eq.s32.totalorder %s30, 1
      %p93 = por %p91, %p92
      %p95 = scmp.ne.s32.totalorder %s78, %s94
      %p96 = scmp.eq.s32.totalorder %s30, 0
      %p97 = por %p95, %p96
      %s99 = sadd.s32 %s98, 1
      %p102 = scmp.eq.s32.totalorder %s24, 1
      %p103 = scmp.ne.s32.totalorder %s98, %s100
      %p104 = scmp.eq.s32.totalorder %s24, 0
      %p105 = por %p103, %p104
      %p106 = scmp.ne.s32.totalorder %s98, %s100
      %p107 = scmp.eq.s32.totalorder %s29, 1
      %p108 = por %p106, %p107
      %p109 = scmp.ne.s32.totalorder %s100, %s101
      %p110 = scmp.eq.s32.totalorder %s29, 0
      %p111 = por %p109, %p110
      %p112 = scmp.ne.s32.totalorder %s100, %s101
      %p113 = scmp.eq.s32.totalorder %s30, 1
      %p114 = por %p112, %p113
      %p116 = scmp.ne.s32.totalorder %s101, %s115
      %p117 = scmp.eq.s32.totalorder %s30, 0
      %p118 = por %p116, %p117
      %s120 = sadd.s32 %s119, 1
      %p123 = scmp.eq.s32.totalorder %s24, 1
      %p124 = scmp.ne.s32.totalorder %s119, %s121
      %p125 = scmp.eq.s32.totalorder %s24, 0
      %p126 = por %p124, %p125
      %p127 = scmp.ne.s32.totalorder %s119, %s121
      %p128 = scmp.eq.s32.totalorder %s29, 1
      %p129 = por %p127, %p128
      %p130 = scmp.ne.s32.totalorder %s121, %s122
      %p131 = scmp.eq.s32.totalorder %s29, 0
      %p132 = por %p130, %p131
      %p133 = scmp.ne.s32.totalorder %s121, %s122
      %p134 = scmp.eq.s32.totalorder %s30, 1
      %p135 = por %p133, %p134
      %p137 = scmp.ne.s32.totalorder %s122, %s136
      %p138 = scmp.eq.s32.totalorder %s30, 0
      %p139 = por %p137, %p138
      %s141 = sadd.s32 %s140, 1
      %p144 = scmp.eq.s32.totalorder %s24, 1
      %p145 = scmp.ne.s32.totalorder %s140, %s142
      %p146 = scmp.eq.s32.totalorder %s24, 0
      %p147 = por %p145, %p146
      %p148 = scmp.ne.s32.totalorder %s140, %s142
      %p149 = scmp.eq.s32.totalorder %s29, 1
      %p150 = por %p148, %p149
      %p151 = scmp.ne.s32.totalorder %s142, %s143
      %p152 = scmp.eq.s32.totalorder %s29, 0
      %p153 = por %p151, %p152
      %p154 = scmp.ne.s32.totalorder %s142, %s143
      %p155 = scmp.eq.s32.totalorder %s30, 1
      %p156 = por %p154, %p155
      %p158 = scmp.ne.s32.totalorder %s143, %s157
      %p159 = scmp.eq.s32.totalorder %s30, 0
      %p160 = por %p158, %p159
      %s162 = sadd.s32 %s161, 1
      %p165 = scmp.eq.s32.totalorder %s24, 1
      %p166 = scmp.ne.s32.totalorder %s161, %s163
      %p167 = scmp.eq.s32.totalorder %s24, 0
      %p168 = por %p166, %p167
      %p169 = scmp.ne.s32.totalorder %s161, %s163
      %p170 = scmp.eq.s32.totalorder %s29, 1
      %p171 = por %p169, %p170
      %p172 = scmp.ne.s32.totalorder %s163, %s164
      %p173 = scmp.eq.s32.totalorder %s29, 0
      %p174 = por %p172, %p173
      %p175 = scmp.ne.s32.totalorder %s163, %s164
      %p176 = scmp.eq.s32.totalorder %s30, 1
      %p177 = por %p175, %p176
      %p179 = scmp.ne.s32.totalorder %s164, %s178
      %p180 = scmp.eq.s32.totalorder %s30, 0
      %p181 = por %p179, %p180
      %s183 = sadd.s32 %s182, 1
      %p186 = scmp.eq.s32.totalorder %s24, 1
      %p187 = scmp.ne.s32.totalorder %s182, %s184
      %p188 = scmp.eq.s32.totalorder %s24, 0
      %p189 = por %p187, %p188
      %p190 = scmp.ne.s32.totalorder %s182, %s184
      %p191 = scmp.eq.s32.totalorder %s29, 1
      %p192 = por %p190, %p191
      %p193 = scmp.ne.s32.totalorder %s184, %s185
      %p194 = scmp.eq.s32.totalorder %s29, 0
      %p195 = por %p193, %p194
      %p196 = scmp.ne.s32.totalorder %s184, %s185
      %p197 = scmp.eq.s32.totalorder %s30, 1
      %p198 = por %p196, %p197
      %p200 = scmp.ne.s32.totalorder %s185, %s199
      %p201 = scmp.eq.s32.totalorder %s30, 0
      %p202 = por %p200, %p201
      %s203 = ssub.s32 %s31, %s43
      %s204 = ssub.s32 %s32, %s39
      %s205 = sor.u32 %s203, %s204
      %p206 = scmp.eq.s32.totalorder %s205, 0
      %s208 = sadd.s32 %s207, 1
      %s209 = scalar_select %p206, %s207, %s208
      %p212 = pneg %p206
      %p213 = scmp.eq.s32.totalorder %s24, 1
      %p214 = por %p212, %p213
      %p215 = scmp.ne.s32.totalorder %s207, %s210
      %p216 = scmp.eq.s32.totalorder %s24, 0
      %p217 = por %p215, %p216
      %p218 = scmp.ne.s32.totalorder %s207, %s210
      %p219 = scmp.eq.s32.totalorder %s29, 1
      %p220 = por %p218, %p219
      %p221 = scmp.ne.s32.totalorder %s210, %s211
      %p222 = scmp.eq.s32.totalorder %s29, 0
      %p223 = por %p221, %p222
      %p224 = scmp.ne.s32.totalorder %s210, %s211
      %p225 = scmp.eq.s32.totalorder %s30, 1
      %p226 = por %p224, %p225
      %p228 = scmp.ne.s32.totalorder %s211, %s227
      %p229 = scmp.eq.s32.totalorder %s30, 0
      %p230 = por %p228, %p229
      %p231 = scmp.le.s32.totalorder 1, %s24
      %p232 = scmp.lt.s32.totalorder %s24, 3
      %p233 = pnand %p231, %p232
      %p234 = pneg %p233
      // Predicated region
      $region9: #{tpu_custom_call.1} parent=5 // pred_check
        _
      $region10: #{tpu_custom_call.1} parent=5 // pred_check_branch
        %236 = sbr.rel (%p233) target = $region12
      $region11: #{tpu_custom_call.1} parent=5 // pred_region
        %s237 = ssub.s32 %s24, 1
        // Predicated region
        $region13: #{tpu_custom_call.1} parent=11 // pred_check
          %p238 = pneg %p111
        $region14: #{tpu_custom_call.1} parent=11 // pred_check_branch
          %240 = sbr.rel (%p238) target = $region16
        $region15: #{tpu_custom_call.1} parent=11 // pred_region
          %242 = vsyncadd [#allocation6], 0
          %s243 = sshll.u32 %s2, 4
          %s244 = int_to_ptr.hbm [resolvable:$true] %s243
          %s245 = sshll.u32 [#allocation7], 4
          %s246 = int_to_ptr.vmem [resolvable:$true] %s245
          %251 = dma.hbm_to_vmem [thread:$0]  %s244, 512, %s246, [#allocation6], 128, 128, 8
        $region16: #{tpu_custom_call.1} parent=11 // pred_fallthru
          _
        // Predicated region
        $region17: #{tpu_custom_call.1} parent=11 // pred_check
          %p252 = pneg %p132
        $region18: #{tpu_custom_call.1} parent=11 // pred_check_branch
          %254 = sbr.rel (%p252) target = $region20
        $region19: #{tpu_custom_call.1} parent=11 // pred_region
          %256 = vsyncadd [#allocation9], 0
          %s257 = sshll.u32 %s3, 4
          %s258 = int_to_ptr.hbm [resolvable:$true] %s257
          %s259 = sshll.u32 [#allocation8], 4
          %s260 = int_to_ptr.vmem [resolvable:$true] %s259
          %265 = dma.hbm_to_vmem [thread:$0]  %s258, 512, %s260, [#allocation9], 128, 128, 8
        $region20: #{tpu_custom_call.1} parent=11 // pred_fallthru
          _
        // Predicated region
        $region21: #{tpu_custom_call.1} parent=11 // pred_check
          %p266 = pneg %p153
        $region22: #{tpu_custom_call.1} parent=11 // pred_check_branch
          %268 = sbr.rel (%p266) target = $region24
        $region23: #{tpu_custom_call.1} parent=11 // pred_region
          %270 = vsyncadd [#allocation9], 0
          %s271 = sshll.u32 %s4, 4
          %s272 = int_to_ptr.hbm [resolvable:$true] %s271
          %s273 = sshll.u32 [#allocation10], 4
          %s274 = int_to_ptr.vmem [resolvable:$true] %s273
          %279 = dma.hbm_to_vmem [thread:$0]  %s272, 512, %s274, [#allocation9], 128, 128, 8
        $region24: #{tpu_custom_call.1} parent=11 // pred_fallthru
          _
        // Predicated region
        $region25: #{tpu_custom_call.1} parent=11 // pred_check
          %p280 = pneg %p174
        $region26: #{tpu_custom_call.1} parent=11 // pred_check_branch
          %282 = sbr.rel (%p280) target = $region28
        $region27: #{tpu_custom_call.1} parent=11 // pred_region
          %284 = vsyncadd [#allocation12], 0
          %s285 = sshll.u32 %s5, 4
          %s286 = int_to_ptr.hbm [resolvable:$true] %s285
          %s287 = sshll.u32 [#allocation11], 4
          %s288 = int_to_ptr.vmem [resolvable:$true] %s287
          %293 = dma.hbm_to_vmem [thread:$0]  %s286, 512, %s288, [#allocation12], 128, 128, 8
        $region28: #{tpu_custom_call.1} parent=11 // pred_fallthru
          _
        // Predicated region
        $region29: #{tpu_custom_call.1} parent=11 // pred_check
          %p294 = pneg %p195
        $region30: #{tpu_custom_call.1} parent=11 // pred_check_branch
          %296 = sbr.rel (%p294) target = $region32
        $region31: #{tpu_custom_call.1} parent=11 // pred_region
          _
        $region32: #{tpu_custom_call.1} parent=11 // pred_fallthru
          _
      $region12: #{tpu_custom_call.1} parent=5 // pred_fallthru
        _
      %p297 = scmp.lt.s32.totalorder %s24, 2
      // Predicated region
      $region33: #{tpu_custom_call.1} parent=5 // pred_check
        %p298 = pneg %p297
      $region34: #{tpu_custom_call.1} parent=5 // pred_check_branch
        %300 = sbr.rel (%p298) target = $region36
      $region35: #{tpu_custom_call.1} parent=5 // pred_region
        // Predicated region
        $region37: #{tpu_custom_call.1} parent=35 // pred_check
          %p301 = pneg %p56
        $region38: #{tpu_custom_call.1} parent=35 // pred_check_branch
          %303 = sbr.rel (%p301) target = $region40
        $region39: #{tpu_custom_call.1} parent=35 // pred_region
          %s304 = sand.u32 %s46, 1
          %s305 = scalar_lea.sflag [#allocation3], %s304
          %s306 = sand.u32 %s46, 1
          %s307 = smul.addr %s306, 8
          %s308 = scalar_lea.vmem [#allocation2], %s307
          %310 = vsyncadd %s305, 0
          %s311 = smul.addr %s31, 8
          %s312 = scalar_lea.hbm %s0, %s311
          %s314 = sshll.u32 %s312, 4
          %s315 = int_to_ptr.hbm [resolvable:$true] %s314
          %s316 = sshll.u32 %s308, 4
          %s317 = int_to_ptr.vmem [resolvable:$true] %s316
          %319 = dma.hbm_to_vmem [thread:$0]  %s315, 128, %s317, %s305
        $region40: #{tpu_custom_call.1} parent=35 // pred_fallthru
          _
        // Predicated region
        $region41: #{tpu_custom_call.1} parent=35 // pred_check
          %p320 = pneg %p84
        $region42: #{tpu_custom_call.1} parent=35 // pred_check_branch
          %322 = sbr.rel (%p320) target = $region44
        $region43: #{tpu_custom_call.1} parent=35 // pred_region
          %s323 = sand.u32 %s24, 1
          %s324 = scalar_lea.sflag [#allocation6], %s323
          %s325 = sand.u32 %s74, 1
          %s326 = smul.addr %s325, 8
          %s327 = scalar_lea.vmem [#allocation5], %s326
          %329 = vsyncadd %s324, 0
          %s330 = sadd.s32 %s32, %s31
          %s331 = smul.addr %s330, 8
          %s332 = scalar_lea.hbm %s1, %s331
          %s334 = sshll.u32 %s332, 4
          %s335 = int_to_ptr.hbm [resolvable:$true] %s334
          %s336 = sshll.u32 %s327, 4
          %s337 = int_to_ptr.vmem [resolvable:$true] %s336
          %339 = dma.hbm_to_vmem [thread:$0]  %s335, 128, %s337, %s324
        $region44: #{tpu_custom_call.1} parent=35 // pred_fallthru
          _
      $region36: #{tpu_custom_call.1} parent=5 // pred_fallthru
        _
      %p340 = scmp.le.s32.totalorder 1, %s24
      %p341 = scmp.lt.s32.totalorder %s24, 3
      %p342 = pnand %p340, %p341
      %p343 = pneg %p342
      // Predicated region
      $region45: #{tpu_custom_call.1} parent=5 // pred_check
        _
      $region46: #{tpu_custom_call.1} parent=5 // pred_check_branch
        %345 = sbr.rel (%p342) target = $region48
      $region47: #{tpu_custom_call.1} parent=5 // pred_region
        %s346 = ssub.s32 %s24, 1
        %s347 = sand.u32 %s49, 1
        %s348 = scalar_lea.sflag [#allocation3], %s347
        %s349 = sand.u32 %s49, 1
        %s350 = smul.addr %s349, 8
        %s351 = scalar_lea.vmem [#allocation2], %s350
        // Predicated region
        $region49: #{tpu_custom_call.1} parent=47 // pred_check
          %p352 = pneg %p62
        $region50: #{tpu_custom_call.1} parent=47 // pred_check_branch
          %354 = sbr.rel (%p352) target = $region52
        $region51: #{tpu_custom_call.1} parent=47 // pred_region
          %356 = dma.done %s348, 128
        $region52: #{tpu_custom_call.1} parent=47 // pred_fallthru
          _
        %s357 = sand.u32 %s29, 1
        %s358 = scalar_lea.sflag [#allocation6], %s357
        %s359 = sand.u32 %s77, 1
        %s360 = smul.addr %s359, 8
        %s361 = scalar_lea.vmem [#allocation5], %s360
        // Predicated region
        $region53: #{tpu_custom_call.1} parent=47 // pred_check
          %p362 = pneg %p90
        $region54: #{tpu_custom_call.1} parent=47 // pred_check_branch
          %364 = sbr.rel (%p362) target = $region56
        $region55: #{tpu_custom_call.1} parent=47 // pred_region
          %366 = dma.done %s358, 128
        $region56: #{tpu_custom_call.1} parent=47 // pred_fallthru
          _
        // Predicated region
        $region57: #{tpu_custom_call.1} parent=47 // pred_check
          %p367 = pneg %p111
        $region58: #{tpu_custom_call.1} parent=47 // pred_check_branch
          %369 = sbr.rel (%p367) target = $region60
        $region59: #{tpu_custom_call.1} parent=47 // pred_region
          %371 = dma.done [#allocation6], 512
        $region60: #{tpu_custom_call.1} parent=47 // pred_fallthru
          _
        // Predicated region
        $region61: #{tpu_custom_call.1} parent=47 // pred_check
          %p372 = pneg %p132
        $region62: #{tpu_custom_call.1} parent=47 // pred_check_branch
          %374 = sbr.rel (%p372) target = $region64
        $region63: #{tpu_custom_call.1} parent=47 // pred_region
          %376 = dma.done [#allocation9], 512
        $region64: #{tpu_custom_call.1} parent=47 // pred_fallthru
          _
        // Predicated region
        $region65: #{tpu_custom_call.1} parent=47 // pred_check
          %p377 = pneg %p153
        $region66: #{tpu_custom_call.1} parent=47 // pred_check_branch
          %379 = sbr.rel (%p377) target = $region68
        $region67: #{tpu_custom_call.1} parent=47 // pred_region
          %381 = dma.done [#allocation9], 512
        $region68: #{tpu_custom_call.1} parent=47 // pred_fallthru
          _
        // Predicated region
        $region69: #{tpu_custom_call.1} parent=47 // pred_check
          %p382 = pneg %p174
        $region70: #{tpu_custom_call.1} parent=47 // pred_check_branch
          %384 = sbr.rel (%p382) target = $region72
        $region71: #{tpu_custom_call.1} parent=47 // pred_region
          %386 = dma.done [#allocation12], 512
        $region72: #{tpu_custom_call.1} parent=47 // pred_fallthru
          _
        %s387 = sand.u32 %s49, 1
        %s388 = scalar_lea.sflag [#allocation3], %s387
        %s389 = sand.u32 %s49, 1
        %s390 = smul.addr %s389, 8
        %s391 = scalar_lea.vmem [#allocation2], %s390
        %p392 = pneg %p62
        %p393 = pneg %p59
        %s394 = sand.u32 %s29, 1
        %s395 = scalar_lea.sflag [#allocation6], %s394
        %s396 = sand.u32 %s77, 1
        %s397 = smul.addr %s396, 8
        %s398 = scalar_lea.vmem [#allocation5], %s397
        %p399 = pneg %p90
        %p400 = pneg %p87
        %p401 = pneg %p111
        %p402 = pneg %p108
        %p403 = pneg %p132
        %p404 = pneg %p129
        %p405 = pneg %p153
        %p406 = pneg %p150
        %p407 = pneg %p174
        %p408 = pneg %p171
        %p409 = pneg %p195
        %p410 = pneg %p192
        %p411 = pneg %p223
        %p412 = pneg %p220
        %s413 = sand.u32 %s210, 1
        %s414 = scalar_lea.sflag [#allocation4], %s413
        %s415 = sand.u32 %s210, 1
        %s416 = smul.addr %s415, 8
        %s417 = scalar_lea.vmem [#allocation13], %s416
        %s418 = smul.u32 %s34, 8
        %v419 = vld [vmem:[%s351] sm:$0xff]
        %v420 = vld [vmem:[%s361] sm:$0xff]
        %v421 = vld [vmem:[#allocation8] sm:$0xff]
        %v422 = vld [vmem:[#allocation8 + $0x8] sm:$0xff]
        %v423 = vld [vmem:[#allocation8 + $0x10] sm:$0xff]
        %v424 = vld [vmem:[#allocation8 + $0x18] sm:$0xff]
        %vm425 = vcmask 261120
        %v427 = vsel %vm425, %v419, 0
        %429 = vmatpush.msra.mxu0 0.0
        %430 = vmatpush.msra.mxu0 0.0
        %431 = vmatpush.msra.mxu0 0.0
        %432 = vmatpush.msra.mxu0 0.0
        %433 = vmatpush.msra.mxu0 0.0
        %434 = vmatpush.msra.mxu0 0.0
        %435 = vmatpush.msra.mxu0 0.0
        %436 = vmatpush.msra.mxu0 0.0
        %437 = vmatpush.msra.mxu0 0.0
        %438 = vmatpush.msra.mxu0 0.0
        %439 = vmatpush.msra.mxu0 0.0
        %440 = vmatpush.msra.mxu0 0.0
        %441 = vmatpush.msra.mxu0 %v424
        %442 = vmatpush.msra.mxu0 %v423
        %443 = vmatpush.msra.mxu0 %v422
        %444 = vmatpush.msra.mxu0 %v421
        %445 = vmatmul.f32.gmra.mxu0 %v427
        %v446 = vpop.f32.mrf.mxu0
        %v447 = vadd.f32 0.0, %v446
        %448 = vdwg.mxu0
        %v449 = vld [vmem:[#allocation10] sm:$0xff]
        %v450 = vld [vmem:[#allocation10 + $0x8] sm:$0xff]
        %v451 = vld [vmem:[#allocation10 + $0x10] sm:$0xff]
        %v452 = vld [vmem:[#allocation10 + $0x18] sm:$0xff]
        %453 = vmatpush.msra.mxu0 0.0
        %454 = vmatpush.msra.mxu0 0.0
        %455 = vmatpush.msra.mxu0 0.0
        %456 = vmatpush.msra.mxu0 0.0
        %457 = vmatpush.msra.mxu0 0.0
        %458 = vmatpush.msra.mxu0 0.0
        %459 = vmatpush.msra.mxu0 0.0
        %460 = vmatpush.msra.mxu0 0.0
        %461 = vmatpush.msra.mxu0 0.0
        %462 = vmatpush.msra.mxu0 0.0
        %463 = vmatpush.msra.mxu0 0.0
        %464 = vmatpush.msra.mxu0 0.0
        %465 = vmatpush.msra.mxu0 %v452
        %466 = vmatpush.msra.mxu0 %v451
        %467 = vmatpush.msra.mxu0 %v450
        %468 = vmatpush.msra.mxu0 %v449
        %469 = vmatmul.f32.gmra.mxu0 %v427
        %v470 = vpop.f32.mrf.mxu0
        %v471 = vadd.f32 0.0, %v470
        %472 = vdwg.mxu0
        %v473 = vld [vmem:[#allocation7] sm:$0xff]
        %v474 = vld [vmem:[#allocation7 + $0x8] sm:$0xff]
        %v475 = vld [vmem:[#allocation7 + $0x10] sm:$0xff]
        %v476 = vld [vmem:[#allocation7 + $0x18] sm:$0xff]
        %v478 = vsel %vm425, %v420, 0
        %480 = vmatpush.msra.mxu0 0.0
        %481 = vmatpush.msra.mxu0 0.0
        %482 = vmatpush.msra.mxu0 0.0
        %483 = vmatpush.msra.mxu0 0.0
        %484 = vmatpush.msra.mxu0 0.0
        %485 = vmatpush.msra.mxu0 0.0
        %486 = vmatpush.msra.mxu0 0.0
        %487 = vmatpush.msra.mxu0 0.0
        %488 = vmatpush.msra.mxu0 0.0
        %489 = vmatpush.msra.mxu0 0.0
        %490 = vmatpush.msra.mxu0 0.0
        %491 = vmatpush.msra.mxu0 0.0
        %492 = vmatpush.msra.mxu0 %v476
        %493 = vmatpush.msra.mxu0 %v475
        %494 = vmatpush.msra.mxu0 %v474
        %495 = vmatpush.msra.mxu0 %v473
        %496 = vmatmul.f32.gmra.mxu0 %v478
        %v497 = vpop.f32.mrf.mxu0
        %v498 = vadd.f32 0.0, %v497
        %499 = vdwg.mxu0
        %v500 = vmul.f32 %v498, 0.35355338
        %502 = vrot.lane.b32.xlu0 %v500, 120
        %v503 = vpop.permute.xlu0 %502
        %505 = vrot.lane.b32.xlu0 %v500, 112
        %v506 = vpop.permute.xlu0 %505
        %508 = vrot.lane.b32.xlu0 %v500, 104
        %v509 = vpop.permute.xlu0 %508
        %v511 = vrot.slane %v506, 4
        %vm512 = vcmask 1047556
        %v513 = vsel %vm512, %v511, %v500
        %v514 = vrot.slane %v500, 4
        %v515 = vsel %vm512, %v506, %v514
        %v517 = vunpack.c.l.s4 1983009808
        %v518 = vunpack.c.0.s8 %v517
        %v519 = vperm.slane %v513, %v518
        %v521 = vunpack.c.l.s4 1983009808
        %v522 = vunpack.c.0.s8 %v521
        %v523 = vperm.slane %v515, %v522
        %v524 = vrot.slane %v509, 4
        %v525 = vsel %vm512, %v524, %v503
        %v526 = vrot.slane %v503, 4
        %v527 = vsel %vm512, %v509, %v526
        %v529 = vunpack.c.l.s4 1983009808
        %v530 = vunpack.c.0.s8 %v529
        %v531 = vperm.slane %v525, %v530
        %v533 = vunpack.c.l.s4 1983009808
        %v534 = vunpack.c.0.s8 %v533
        %v535 = vperm.slane %v527, %v534
        %v536 = vrot.slane %v531, 4
        %v537 = vsel %vm512, %v536, %v519
        %v538 = vrot.slane %v519, 4
        %v539 = vsel %vm512, %v531, %v538
        %v541 = vunpack.c.l.s4 1934713408
        %v542 = vunpack.c.0.s8 %v541
        %v543 = vperm.slane %v537, %v542
        %v545 = vunpack.c.l.s4 1934713408
        %v546 = vunpack.c.0.s8 %v545
        %v547 = vperm.slane %v539, %v546
        %v548 = vrot.slane %v535, 4
        %v549 = vsel %vm512, %v548, %v523
        %v550 = vrot.slane %v523, 4
        %v551 = vsel %vm512, %v535, %v550
        %v553 = vunpack.c.l.s4 1934713408
        %v554 = vunpack.c.0.s8 %v553
        %v555 = vperm.slane %v549, %v554
        %v557 = vunpack.c.l.s4 1934713408
        %v558 = vunpack.c.0.s8 %v557
        %v559 = vperm.slane %v551, %v558
        %v560 = vrot.slane %v543, 4
        %v561 = vsel %vm512, 0.0, %v560
        %v562 = vrot.slane %v547, 4
        %v563 = vsel %vm512, 0.0, %v562
        %v564 = vrot.slane %v555, 4
        %v565 = vsel %vm512, 0.0, %v564
        %v566 = vrot.slane %v559, 4
        %v567 = vsel %vm512, 0.0, %v566
        %v568 = vsel %vm512, %v562, %v543
        %v570 = vunpack.c.l.s4 1983009808
        %v571 = vunpack.c.0.s8 %v570
        %v572 = vperm.slane %v568, %v571
        %v573 = vrot.slane %v563, 4
        %v574 = vsel %vm512, %v573, %v561
        %v576 = vunpack.c.l.s4 1983009808
        %v577 = vunpack.c.0.s8 %v576
        %v578 = vperm.slane %v574, %v577
        %v579 = vsel %vm512, %v566, %v555
        %v581 = vunpack.c.l.s4 1983009808
        %v582 = vunpack.c.0.s8 %v581
        %v583 = vperm.slane %v579, %v582
        %v584 = vrot.slane %v567, 4
        %v585 = vsel %vm512, %v584, %v565
        %v587 = vunpack.c.l.s4 1983009808
        %v588 = vunpack.c.0.s8 %v587
        %v589 = vperm.slane %v585, %v588
        %v590 = vrot.slane %v578, 4
        %v591 = vsel %vm512, %v590, %v572
        %v592 = vrot.slane %v572, 4
        %v593 = vsel %vm512, %v578, %v592
        %v595 = vunpack.c.l.s4 1934713408
        %v596 = vunpack.c.0.s8 %v595
        %v597 = vperm.slane %v591, %v596
        %v599 = vunpack.c.l.s4 1934713408
        %v600 = vunpack.c.0.s8 %v599
        %v601 = vperm.slane %v593, %v600
        %v602 = vrot.slane %v589, 4
        %v603 = vsel %vm512, %v602, %v583
        %v604 = vrot.slane %v583, 4
        %v605 = vsel %vm512, %v589, %v604
        %v607 = vunpack.c.l.s4 1934713408
        %v608 = vunpack.c.0.s8 %v607
        %v609 = vperm.slane %v603, %v608
        %v611 = vunpack.c.l.s4 1934713408
        %v612 = vunpack.c.0.s8 %v611
        %v613 = vperm.slane %v605, %v612
        %v614 = vrot.slane %v609, 4
        %v615 = vsel %vm512, %v614, %v597
        %v616 = vrot.slane %v597, 4
        %v617 = vsel %vm512, %v609, %v616
        %v618 = vrot.slane %v613, 4
        %v619 = vsel %vm512, %v618, %v601
        %v620 = vrot.slane %v601, 4
        %v621 = vsel %vm512, %v613, %v620
        %623 = vrot.lane.b32.xlu0 %v447, 120
        %v624 = vpop.permute.xlu0 %623
        %626 = vrot.lane.b32.xlu0 %v447, 112
        %v627 = vpop.permute.xlu0 %626
        %629 = vrot.lane.b32.xlu0 %v447, 104
        %v630 = vpop.permute.xlu0 %629
        %v632 = vrot.slane %v627, 4
        %v633 = vsel %vm512, %v632, %v447
        %v634 = vrot.slane %v447, 4
        %v635 = vsel %vm512, %v627, %v634
        %v637 = vunpack.c.l.s4 1983009808
        %v638 = vunpack.c.0.s8 %v637
        %v639 = vperm.slane %v633, %v638
        %v641 = vunpack.c.l.s4 1983009808
        %v642 = vunpack.c.0.s8 %v641
        %v643 = vperm.slane %v635, %v642
        %v644 = vrot.slane %v630, 4
        %v645 = vsel %vm512, %v644, %v624
        %v646 = vrot.slane %v624, 4
        %v647 = vsel %vm512, %v630, %v646
        %v649 = vunpack.c.l.s4 1983009808
        %v650 = vunpack.c.0.s8 %v649
        %v651 = vperm.slane %v645, %v650
        %v653 = vunpack.c.l.s4 1983009808
        %v654 = vunpack.c.0.s8 %v653
        %v655 = vperm.slane %v647, %v654
        %v656 = vrot.slane %v651, 4
        %v657 = vsel %vm512, %v656, %v639
        %v658 = vrot.slane %v639, 4
        %v659 = vsel %vm512, %v651, %v658
        %v661 = vunpack.c.l.s4 1934713408
        %v662 = vunpack.c.0.s8 %v661
        %v663 = vperm.slane %v657, %v662
        %v665 = vunpack.c.l.s4 1934713408
        %v666 = vunpack.c.0.s8 %v665
        %v667 = vperm.slane %v659, %v666
        %v668 = vrot.slane %v655, 4
        %v669 = vsel %vm512, %v668, %v643
        %v670 = vrot.slane %v643, 4
        %v671 = vsel %vm512, %v655, %v670
        %v673 = vunpack.c.l.s4 1934713408
        %v674 = vunpack.c.0.s8 %v673
        %v675 = vperm.slane %v669, %v674
        %v677 = vunpack.c.l.s4 1934713408
        %v678 = vunpack.c.0.s8 %v677
        %v679 = vperm.slane %v671, %v678
        %v680 = vrot.slane %v663, 4
        %v681 = vsel %vm512, 0.0, %v680
        %v682 = vrot.slane %v667, 4
        %v683 = vsel %vm512, 0.0, %v682
        %v684 = vrot.slane %v675, 4
        %v685 = vsel %vm512, 0.0, %v684
        %v686 = vrot.slane %v679, 4
        %v687 = vsel %vm512, 0.0, %v686
        %v688 = vsel %vm512, %v682, %v663
        %v690 = vunpack.c.l.s4 1983009808
        %v691 = vunpack.c.0.s8 %v690
        %v692 = vperm.slane %v688, %v691
        %v693 = vrot.slane %v683, 4
        %v694 = vsel %vm512, %v693, %v681
        %v696 = vunpack.c.l.s4 1983009808
        %v697 = vunpack.c.0.s8 %v696
        %v698 = vperm.slane %v694, %v697
        %v699 = vsel %vm512, %v686, %v675
        %v701 = vunpack.c.l.s4 1983009808
        %v702 = vunpack.c.0.s8 %v701
        %v703 = vperm.slane %v699, %v702
        %v704 = vrot.slane %v687, 4
        %v705 = vsel %vm512, %v704, %v685
        %v707 = vunpack.c.l.s4 1983009808
        %v708 = vunpack.c.0.s8 %v707
        %v709 = vperm.slane %v705, %v708
        %v710 = vrot.slane %v698, 4
        %v711 = vsel %vm512, %v710, %v692
        %v712 = vrot.slane %v692, 4
        %v713 = vsel %vm512, %v698, %v712
        %v715 = vunpack.c.l.s4 1934713408
        %v716 = vunpack.c.0.s8 %v715
        %v717 = vperm.slane %v711, %v716
        %v719 = vunpack.c.l.s4 1934713408
        %v720 = vunpack.c.0.s8 %v719
        %v721 = vperm.slane %v713, %v720
        %v722 = vrot.slane %v709, 4
        %v723 = vsel %vm512, %v722, %v703
        %v724 = vrot.slane %v703, 4
        %v725 = vsel %vm512, %v709, %v724
        %v727 = vunpack.c.l.s4 1934713408
        %v728 = vunpack.c.0.s8 %v727
        %v729 = vperm.slane %v723, %v728
        %v731 = vunpack.c.l.s4 1934713408
        %v732 = vunpack.c.0.s8 %v731
        %v733 = vperm.slane %v725, %v732
        %v734 = vrot.slane %v729, 4
        %v735 = vsel %vm512, %v734, %v717
        %v736 = vrot.slane %v717, 4
        %v737 = vsel %vm512, %v729, %v736
        %v738 = vrot.slane %v733, 4
        %v739 = vsel %vm512, %v738, %v721
        %v740 = vrot.slane %v721, 4
        %v741 = vsel %vm512, %v733, %v740
        %743 = vrot.lane.b32.xlu0 %v471, 120
        %v744 = vpop.permute.xlu0 %743
        %746 = vrot.lane.b32.xlu0 %v471, 112
        %v747 = vpop.permute.xlu0 %746
        %749 = vrot.lane.b32.xlu0 %v471, 104
        %v750 = vpop.permute.xlu0 %749
        %v752 = vrot.slane %v747, 4
        %v753 = vsel %vm512, %v752, %v471
        %v754 = vrot.slane %v471, 4
        %v755 = vsel %vm512, %v747, %v754
        %v757 = vunpack.c.l.s4 1983009808
        %v758 = vunpack.c.0.s8 %v757
        %v759 = vperm.slane %v753, %v758
        %v761 = vunpack.c.l.s4 1983009808
        %v762 = vunpack.c.0.s8 %v761
        %v763 = vperm.slane %v755, %v762
        %v764 = vrot.slane %v750, 4
        %v765 = vsel %vm512, %v764, %v744
        %v766 = vrot.slane %v744, 4
        %v767 = vsel %vm512, %v750, %v766
        %v769 = vunpack.c.l.s4 1983009808
        %v770 = vunpack.c.0.s8 %v769
        %v771 = vperm.slane %v765, %v770
        %v773 = vunpack.c.l.s4 1983009808
        %v774 = vunpack.c.0.s8 %v773
        %v775 = vperm.slane %v767, %v774
        %v776 = vrot.slane %v771, 4
        %v777 = vsel %vm512, %v776, %v759
        %v778 = vrot.slane %v759, 4
        %v779 = vsel %vm512, %v771, %v778
        %v781 = vunpack.c.l.s4 1934713408
        %v782 = vunpack.c.0.s8 %v781
        %v783 = vperm.slane %v777, %v782
        %v785 = vunpack.c.l.s4 1934713408
        %v786 = vunpack.c.0.s8 %v785
        %v787 = vperm.slane %v779, %v786
        %v788 = vrot.slane %v775, 4
        %v789 = vsel %vm512, %v788, %v763
        %v790 = vrot.slane %v763, 4
        %v791 = vsel %vm512, %v775, %v790
        %v793 = vunpack.c.l.s4 1934713408
        %v794 = vunpack.c.0.s8 %v793
        %v795 = vperm.slane %v789, %v794
        %v797 = vunpack.c.l.s4 1934713408
        %v798 = vunpack.c.0.s8 %v797
        %v799 = vperm.slane %v791, %v798
        %v800 = vrot.slane %v783, 4
        %v801 = vsel %vm512, 0.0, %v800
        %v802 = vrot.slane %v787, 4
        %v803 = vsel %vm512, 0.0, %v802
        %v804 = vrot.slane %v795, 4
        %v805 = vsel %vm512, 0.0, %v804
        %v806 = vrot.slane %v799, 4
        %v807 = vsel %vm512, 0.0, %v806
        %v808 = vsel %vm512, %v802, %v783
        %v810 = vunpack.c.l.s4 1983009808
        %v811 = vunpack.c.0.s8 %v810
        %v812 = vperm.slane %v808, %v811
        %v813 = vrot.slane %v803, 4
        %v814 = vsel %vm512, %v813, %v801
        %v816 = vunpack.c.l.s4 1983009808
        %v817 = vunpack.c.0.s8 %v816
        %v818 = vperm.slane %v814, %v817
        %v819 = vsel %vm512, %v806, %v795
        %v821 = vunpack.c.l.s4 1983009808
        %v822 = vunpack.c.0.s8 %v821
        %v823 = vperm.slane %v819, %v822
        %v824 = vrot.slane %v807, 4
        %v825 = vsel %vm512, %v824, %v805
        %v827 = vunpack.c.l.s4 1983009808
        %v828 = vunpack.c.0.s8 %v827
        %v829 = vperm.slane %v825, %v828
        %v830 = vrot.slane %v818, 4
        %v831 = vsel %vm512, %v830, %v812
        %v832 = vrot.slane %v812, 4
        %v833 = vsel %vm512, %v818, %v832
        %v835 = vunpack.c.l.s4 1934713408
        %v836 = vunpack.c.0.s8 %v835
        %v837 = vperm.slane %v831, %v836
        %v839 = vunpack.c.l.s4 1934713408
        %v840 = vunpack.c.0.s8 %v839
        %v841 = vperm.slane %v833, %v840
        %v842 = vrot.slane %v829, 4
        %v843 = vsel %vm512, %v842, %v823
        %v844 = vrot.slane %v823, 4
        %v845 = vsel %vm512, %v829, %v844
        %v847 = vunpack.c.l.s4 1934713408
        %v848 = vunpack.c.0.s8 %v847
        %v849 = vperm.slane %v843, %v848
        %v851 = vunpack.c.l.s4 1934713408
        %v852 = vunpack.c.0.s8 %v851
        %v853 = vperm.slane %v845, %v852
        %v854 = vrot.slane %v849, 4
        %v855 = vsel %vm512, %v854, %v837
        %v856 = vrot.slane %v837, 4
        %v857 = vsel %vm512, %v849, %v856
        %v858 = vrot.slane %v853, 4
        %v859 = vsel %vm512, %v858, %v841
        %v860 = vrot.slane %v841, 4
        %v861 = vsel %vm512, %v853, %v860
        %v862 = vlaneseq
        %v863 = vshrl.u32 %v862, 7
        %v864 = vstv %s418
        %v865 = vadd.s32 %v863, %v864
        %v866 = vlaneseq
        %v867 = vand.u32 %v866, 127
        %vm868 = vcmp.gt.s32.totalorder %v867, %v865
        %vm869 = vcmp.ge.s32.totalorder %v867, 8
        %vm870 = vmor %vm868, %vm869
        %v871 = vsel %vm870, -1e+30, 0.0
        %vm872 = vcmask 64512
        %v874 = vsel %vm872, %v615, 0
        %v877 = vsel %vm872, %v735, 0
        %879 = vmatpush.xpose.msra.mxu0 0.0
        %880 = vmatpush.xpose.msra.mxu0 0.0
        %881 = vmatpush.xpose.msra.mxu0 0.0
        %882 = vmatpush.xpose.msra.mxu0 0.0
        %883 = vmatpush.xpose.msra.mxu0 0.0
        %884 = vmatpush.xpose.msra.mxu0 0.0
        %885 = vmatpush.xpose.msra.mxu0 0.0
        %886 = vmatpush.xpose.msra.mxu0 0.0
        %887 = vmatpush.xpose.msra.mxu0 0.0
        %888 = vmatpush.xpose.msra.mxu0 0.0
        %889 = vmatpush.xpose.msra.mxu0 0.0
        %890 = vmatpush.xpose.msra.mxu0 0.0
        %891 = vmatpush.xpose.msra.mxu0 0.0
        %892 = vmatpush.xpose.msra.mxu0 0.0
        %893 = vmatpush.xpose.msra.mxu0 0.0
        %894 = vmatpush.xpose.msra.mxu0 %v877
        %895 = vmatmul.f32.gmra.mxu0 %v874
        %v896 = vpop.f32.mrf.mxu0
        %v897 = vadd.f32 %v871, %v896
        %898 = vdwg.mxu0
        %v900 = vsel %vm872, %v617, 0
        %v903 = vsel %vm872, %v737, 0
        %905 = vmatpush.xpose.msra.mxu0 0.0
        %906 = vmatpush.xpose.msra.mxu0 0.0
        %907 = vmatpush.xpose.msra.mxu0 0.0
        %908 = vmatpush.xpose.msra.mxu0 0.0
        %909 = vmatpush.xpose.msra.mxu0 0.0
        %910 = vmatpush.xpose.msra.mxu0 0.0
        %911 = vmatpush.xpose.msra.mxu0 0.0
        %912 = vmatpush.xpose.msra.mxu0 0.0
        %913 = vmatpush.xpose.msra.mxu0 0.0
        %914 = vmatpush.xpose.msra.mxu0 0.0
        %915 = vmatpush.xpose.msra.mxu0 0.0
        %916 = vmatpush.xpose.msra.mxu0 0.0
        %917 = vmatpush.xpose.msra.mxu0 0.0
        %918 = vmatpush.xpose.msra.mxu0 0.0
        %919 = vmatpush.xpose.msra.mxu0 0.0
        %920 = vmatpush.xpose.msra.mxu0 %v903
        %921 = vmatmul.f32.gmra.mxu0 %v900
        %v922 = vpop.f32.mrf.mxu0
        %v923 = vadd.f32 %v871, %v922
        %924 = vdwg.mxu0
        %v926 = vsel %vm872, %v619, 0
        %v929 = vsel %vm872, %v739, 0
        %931 = vmatpush.xpose.msra.mxu0 0.0
        %932 = vmatpush.xpose.msra.mxu0 0.0
        %933 = vmatpush.xpose.msra.mxu0 0.0
        %934 = vmatpush.xpose.msra.mxu0 0.0
        %935 = vmatpush.xpose.msra.mxu0 0.0
        %936 = vmatpush.xpose.msra.mxu0 0.0
        %937 = vmatpush.xpose.msra.mxu0 0.0
        %938 = vmatpush.xpose.msra.mxu0 0.0
        %939 = vmatpush.xpose.msra.mxu0 0.0
        %940 = vmatpush.xpose.msra.mxu0 0.0
        %941 = vmatpush.xpose.msra.mxu0 0.0
        %942 = vmatpush.xpose.msra.mxu0 0.0
        %943 = vmatpush.xpose.msra.mxu0 0.0
        %944 = vmatpush.xpose.msra.mxu0 0.0
        %945 = vmatpush.xpose.msra.mxu0 0.0
        %946 = vmatpush.xpose.msra.mxu0 %v929
        %947 = vmatmul.f32.gmra.mxu0 %v926
        %v948 = vpop.f32.mrf.mxu0
        %v949 = vadd.f32 %v871, %v948
        %950 = vdwg.mxu0
        %v952 = vsel %vm872, %v621, 0
        %v955 = vsel %vm872, %v741, 0
        %957 = vmatpush.xpose.msra.mxu0 0.0
        %958 = vmatpush.xpose.msra.mxu0 0.0
        %959 = vmatpush.xpose.msra.mxu0 0.0
        %960 = vmatpush.xpose.msra.mxu0 0.0
        %961 = vmatpush.xpose.msra.mxu0 0.0
        %962 = vmatpush.xpose.msra.mxu0 0.0
        %963 = vmatpush.xpose.msra.mxu0 0.0
        %964 = vmatpush.xpose.msra.mxu0 0.0
        %965 = vmatpush.xpose.msra.mxu0 0.0
        %966 = vmatpush.xpose.msra.mxu0 0.0
        %967 = vmatpush.xpose.msra.mxu0 0.0
        %968 = vmatpush.xpose.msra.mxu0 0.0
        %969 = vmatpush.xpose.msra.mxu0 0.0
        %970 = vmatpush.xpose.msra.mxu0 0.0
        %971 = vmatpush.xpose.msra.mxu0 0.0
        %972 = vmatpush.xpose.msra.mxu0 %v955
        %973 = vmatmul.f32.gmra.mxu0 %v952
        %v974 = vpop.f32.mrf.mxu0
        %v975 = vadd.f32 %v871, %v974
        %976 = vdwg.mxu0
        %v977 = vsel %vm872, %v897, -inf
        %978 = vmax.xlane.f32.xlu0 %v977
        %v979 = vpop.xlane.xlu0 %978
        %v980 = vsel %vm872, %v923, -inf
        %981 = vmax.xlane.f32.xlu0 %v980
        %v982 = vpop.xlane.xlu0 %981
        %v983 = vsel %vm872, %v949, -inf
        %984 = vmax.xlane.f32.xlu0 %v983
        %v985 = vpop.xlane.xlu0 %984
        %v986 = vsel %vm872, %v975, -inf
        %987 = vmax.xlane.f32.xlu0 %v986
        %v988 = vpop.xlane.xlu0 %987
        %v989 = vsub.f32 %v897, %v979
        %v990 = vsub.f32 %v923, %v982
        %v991 = vsub.f32 %v949, %v985
        %v992 = vsub.f32 %v975, %v988
        %v993 = vmul.f32 %v989, 1.442695
        %v994 = vpow.pop %v993
        %v995 = vmul.f32 %v990, 1.442695
        %v996 = vpow.pop %v995
        %v997 = vmul.f32 %v991, 1.442695
        %v998 = vpow.pop %v997
        %v999 = vmul.f32 %v992, 1.442695
        %v1000 = vpow.pop %v999
        %v1001 = vsel %vm872, %v994, 0.0
        %1002 = vadd.xlane.f32.xlu0 %v1001
        %v1003 = vpop.xlane.xlu0 %1002
        %v1004 = vsel %vm872, %v996, 0.0
        %1005 = vadd.xlane.f32.xlu0 %v1004
        %v1006 = vpop.xlane.xlu0 %1005
        %v1007 = vsel %vm872, %v998, 0.0
        %1008 = vadd.xlane.f32.xlu0 %v1007
        %v1009 = vpop.xlane.xlu0 %1008
        %v1010 = vsel %vm872, %v1000, 0.0
        %1011 = vadd.xlane.f32.xlu0 %v1010
        %v1012 = vpop.xlane.xlu0 %1011
        %v1013 = vrcp.pop %v1003
        %v1014 = vmul.f32 %v1003, %v1013
        %v1015 = vsub.f32 1.0, %v1014
        %v1016 = vmul.f32 %v1013, %v1015
        %v1017 = vadd.f32 %v1013, %v1016
        %vm1018 = vweird.f32 %v1003
        %vm1019 = vweird.f32 %v1013
        %vm1020 = vmor %vm1018, %vm1019
        %v1021 = vsel %vm1020, %v1013, %v1017
        %v1022 = vand.u32 2147483647, %v1003
        %vm1023 = vcmp.eq.f32.partialorder %v1022, 8.507059e+37
        %v1024 = vand.u32 %v1003, 2147483648
        %v1025 = vor.u32 1.1754944e-38, %v1024
        %v1026 = vsel %vm1023, %v1025, %v1021
        %v1027 = vrcp.pop %v1006
        %v1028 = vmul.f32 %v1006, %v1027
        %v1029 = vsub.f32 1.0, %v1028
        %v1030 = vmul.f32 %v1027, %v1029
        %v1031 = vadd.f32 %v1027, %v1030
        %vm1032 = vweird.f32 %v1006
        %vm1033 = vweird.f32 %v1027
        %vm1034 = vmor %vm1032, %vm1033
        %v1035 = vsel %vm1034, %v1027, %v1031
        %v1036 = vand.u32 2147483647, %v1006
        %vm1037 = vcmp.eq.f32.partialorder %v1036, 8.507059e+37
        %v1038 = vand.u32 %v1006, 2147483648
        %v1039 = vor.u32 1.1754944e-38, %v1038
        %v1040 = vsel %vm1037, %v1039, %v1035
        %v1041 = vrcp.pop %v1009
        %v1042 = vmul.f32 %v1009, %v1041
        %v1043 = vsub.f32 1.0, %v1042
        %v1044 = vmul.f32 %v1041, %v1043
        %v1045 = vadd.f32 %v1041, %v1044
        %vm1046 = vweird.f32 %v1009
        %vm1047 = vweird.f32 %v1041
        %vm1048 = vmor %vm1046, %vm1047
        %v1049 = vsel %vm1048, %v1041, %v1045
        %v1050 = vand.u32 2147483647, %v1009
        %vm1051 = vcmp.eq.f32.partialorder %v1050, 8.507059e+37
        %v1052 = vand.u32 %v1009, 2147483648
        %v1053 = vor.u32 1.1754944e-38, %v1052
        %v1054 = vsel %vm1051, %v1053, %v1049
        %v1055 = vrcp.pop %v1012
        %v1056 = vmul.f32 %v1012, %v1055
        %v1057 = vsub.f32 1.0, %v1056
        %v1058 = vmul.f32 %v1055, %v1057
        %v1059 = vadd.f32 %v1055, %v1058
        %vm1060 = vweird.f32 %v1012
        %vm1061 = vweird.f32 %v1055
        %vm1062 = vmor %vm1060, %vm1061
        %v1063 = vsel %vm1062, %v1055, %v1059
        %v1064 = vand.u32 2147483647, %v1012
        %vm1065 = vcmp.eq.f32.partialorder %v1064, 8.507059e+37
        %v1066 = vand.u32 %v1012, 2147483648
        %v1067 = vor.u32 1.1754944e-38, %v1066
        %v1068 = vsel %vm1065, %v1067, %v1063
        %v1069 = vmul.f32 %v994, %v1026
        %v1070 = vmul.f32 %v996, %v1040
        %v1071 = vmul.f32 %v998, %v1054
        %v1072 = vmul.f32 %v1000, %v1068
        %v1074 = vsel %vm872, %v1069, 0
        %1076 = vmatpush.msra.mxu0 0.0
        %1077 = vmatpush.msra.mxu0 0.0
        %1078 = vmatpush.msra.mxu0 0.0
        %1079 = vmatpush.msra.mxu0 0.0
        %1080 = vmatpush.msra.mxu0 0.0
        %1081 = vmatpush.msra.mxu0 0.0
        %1082 = vmatpush.msra.mxu0 0.0
        %1083 = vmatpush.msra.mxu0 0.0
        %1084 = vmatpush.msra.mxu0 0.0
        %1085 = vmatpush.msra.mxu0 0.0
        %1086 = vmatpush.msra.mxu0 0.0
        %1087 = vmatpush.msra.mxu0 0.0
        %1088 = vmatpush.msra.mxu0 0.0
        %1089 = vmatpush.msra.mxu0 0.0
        %1090 = vmatpush.msra.mxu0 0.0
        %1091 = vmatpush.msra.mxu0 %v855
        %1092 = vmatmul.f32.gmra.mxu0 %v1074
        %v1093 = vpop.f32.mrf.mxu0
        %v1094 = vadd.f32 0.0, %v1093
        %1095 = vdwg.mxu0
        %v1097 = vsel %vm872, %v1070, 0
        %1099 = vmatpush.msra.mxu0 0.0
        %1100 = vmatpush.msra.mxu0 0.0
        %1101 = vmatpush.msra.mxu0 0.0
        %1102 = vmatpush.msra.mxu0 0.0
        %1103 = vmatpush.msra.mxu0 0.0
        %1104 = vmatpush.msra.mxu0 0.0
        %1105 = vmatpush.msra.mxu0 0.0
        %1106 = vmatpush.msra.mxu0 0.0
        %1107 = vmatpush.msra.mxu0 0.0
        %1108 = vmatpush.msra.mxu0 0.0
        %1109 = vmatpush.msra.mxu0 0.0
        %1110 = vmatpush.msra.mxu0 0.0
        %1111 = vmatpush.msra.mxu0 0.0
        %1112 = vmatpush.msra.mxu0 0.0
        %1113 = vmatpush.msra.mxu0 0.0
        %1114 = vmatpush.msra.mxu0 %v857
        %1115 = vmatmul.f32.gmra.mxu0 %v1097
        %v1116 = vpop.f32.mrf.mxu0
        %v1117 = vadd.f32 0.0, %v1116
        %1118 = vdwg.mxu0
        %v1120 = vsel %vm872, %v1071, 0
        %1122 = vmatpush.msra.mxu0 0.0
        %1123 = vmatpush.msra.mxu0 0.0
        %1124 = vmatpush.msra.mxu0 0.0
        %1125 = vmatpush.msra.mxu0 0.0
        %1126 = vmatpush.msra.mxu0 0.0
        %1127 = vmatpush.msra.mxu0 0.0
        %1128 = vmatpush.msra.mxu0 0.0
        %1129 = vmatpush.msra.mxu0 0.0
        %1130 = vmatpush.msra.mxu0 0.0
        %1131 = vmatpush.msra.mxu0 0.0
        %1132 = vmatpush.msra.mxu0 0.0
        %1133 = vmatpush.msra.mxu0 0.0
        %1134 = vmatpush.msra.mxu0 0.0
        %1135 = vmatpush.msra.mxu0 0.0
        %1136 = vmatpush.msra.mxu0 0.0
        %1137 = vmatpush.msra.mxu0 %v859
        %1138 = vmatmul.f32.gmra.mxu0 %v1120
        %v1139 = vpop.f32.mrf.mxu0
        %v1140 = vadd.f32 0.0, %v1139
        %1141 = vdwg.mxu0
        %v1143 = vsel %vm872, %v1072, 0
        %1145 = vmatpush.msra.mxu0 0.0
        %1146 = vmatpush.msra.mxu0 0.0
        %1147 = vmatpush.msra.mxu0 0.0
        %1148 = vmatpush.msra.mxu0 0.0
        %1149 = vmatpush.msra.mxu0 0.0
        %1150 = vmatpush.msra.mxu0 0.0
        %1151 = vmatpush.msra.mxu0 0.0
        %1152 = vmatpush.msra.mxu0 0.0
        %1153 = vmatpush.msra.mxu0 0.0
        %1154 = vmatpush.msra.mxu0 0.0
        %1155 = vmatpush.msra.mxu0 0.0
        %1156 = vmatpush.msra.mxu0 0.0
        %1157 = vmatpush.msra.mxu0 0.0
        %1158 = vmatpush.msra.mxu0 0.0
        %1159 = vmatpush.msra.mxu0 0.0
        %1160 = vmatpush.msra.mxu0 %v861
        %1161 = vmatmul.f32.gmra.mxu0 %v1143
        %v1162 = vpop.f32.mrf.mxu0
        %v1163 = vadd.f32 0.0, %v1162
        %1164 = vdwg.mxu0
        %v1165 = vrot.slane %v1140, 4
        %v1166 = vsel %vm512, %v1165, %v1094
        %v1167 = vrot.slane %v1094, 4
        %v1168 = vsel %vm512, %v1140, %v1167
        %v1170 = vunpack.c.l.s4 1983009808
        %v1171 = vunpack.c.0.s8 %v1170
        %v1172 = vperm.slane %v1166, %v1171
        %v1174 = vunpack.c.l.s4 1983009808
        %v1175 = vunpack.c.0.s8 %v1174
        %v1176 = vperm.slane %v1168, %v1175
        %v1177 = vrot.slane %v1163, 4
        %v1178 = vsel %vm512, %v1177, %v1117
        %v1179 = vrot.slane %v1117, 4
        %v1180 = vsel %vm512, %v1163, %v1179
        %v1182 = vunpack.c.l.s4 1983009808
        %v1183 = vunpack.c.0.s8 %v1182
        %v1184 = vperm.slane %v1178, %v1183
        %v1186 = vunpack.c.l.s4 1983009808
        %v1187 = vunpack.c.0.s8 %v1186
        %v1188 = vperm.slane %v1180, %v1187
        %v1189 = vrot.slane %v1184, 4
        %v1190 = vsel %vm512, %v1189, %v1172
        %v1191 = vrot.slane %v1172, 4
        %v1192 = vsel %vm512, %v1184, %v1191
        %v1194 = vunpack.c.l.s4 1934713408
        %v1195 = vunpack.c.0.s8 %v1194
        %v1196 = vperm.slane %v1190, %v1195
        %v1198 = vunpack.c.l.s4 1934713408
        %v1199 = vunpack.c.0.s8 %v1198
        %v1200 = vperm.slane %v1192, %v1199
        %v1201 = vrot.slane %v1188, 4
        %v1202 = vsel %vm512, %v1201, %v1176
        %v1203 = vrot.slane %v1176, 4
        %v1204 = vsel %vm512, %v1188, %v1203
        %v1206 = vunpack.c.l.s4 1934713408
        %v1207 = vunpack.c.0.s8 %v1206
        %v1208 = vperm.slane %v1202, %v1207
        %v1210 = vunpack.c.l.s4 1934713408
        %v1211 = vunpack.c.0.s8 %v1210
        %v1212 = vperm.slane %v1204, %v1211
        %v1213 = vrot.slane %v1196, 4
        %v1214 = vsel %vm512, 0.0, %v1213
        %v1215 = vrot.slane %v1200, 4
        %v1216 = vsel %vm512, 0.0, %v1215
        %v1217 = vrot.slane %v1208, 4
        %v1218 = vsel %vm512, 0.0, %v1217
        %v1219 = vrot.slane %v1212, 4
        %v1220 = vsel %vm512, 0.0, %v1219
        %v1221 = vsel %vm512, %v1215, %v1196
        %v1223 = vunpack.c.l.s4 1983009808
        %v1224 = vunpack.c.0.s8 %v1223
        %v1225 = vperm.slane %v1221, %v1224
        %v1226 = vrot.slane %v1216, 4
        %v1227 = vsel %vm512, %v1226, %v1214
        %v1229 = vunpack.c.l.s4 1983009808
        %v1230 = vunpack.c.0.s8 %v1229
        %v1231 = vperm.slane %v1227, %v1230
        %v1232 = vsel %vm512, %v1219, %v1208
        %v1234 = vunpack.c.l.s4 1983009808
        %v1235 = vunpack.c.0.s8 %v1234
        %v1236 = vperm.slane %v1232, %v1235
        %v1237 = vrot.slane %v1220, 4
        %v1238 = vsel %vm512, %v1237, %v1218
        %v1240 = vunpack.c.l.s4 1983009808
        %v1241 = vunpack.c.0.s8 %v1240
        %v1242 = vperm.slane %v1238, %v1241
        %v1243 = vrot.slane %v1231, 4
        %v1244 = vsel %vm512, %v1243, %v1225
        %v1245 = vrot.slane %v1225, 4
        %v1246 = vsel %vm512, %v1231, %v1245
        %v1248 = vunpack.c.l.s4 1934713408
        %v1249 = vunpack.c.0.s8 %v1248
        %v1250 = vperm.slane %v1244, %v1249
        %v1252 = vunpack.c.l.s4 1934713408
        %v1253 = vunpack.c.0.s8 %v1252
        %v1254 = vperm.slane %v1246, %v1253
        %v1255 = vrot.slane %v1242, 4
        %v1256 = vsel %vm512, %v1255, %v1236
        %v1257 = vrot.slane %v1236, 4
        %v1258 = vsel %vm512, %v1242, %v1257
        %v1260 = vunpack.c.l.s4 1934713408
        %v1261 = vunpack.c.0.s8 %v1260
        %v1262 = vperm.slane %v1256, %v1261
        %v1264 = vunpack.c.l.s4 1934713408
        %v1265 = vunpack.c.0.s8 %v1264
        %v1266 = vperm.slane %v1258, %v1265
        %v1267 = vrot.slane %v1262, 4
        %v1268 = vsel %vm512, %v1267, %v1250
        %v1269 = vrot.slane %v1250, 4
        %v1270 = vsel %vm512, %v1262, %v1269
        %v1271 = vrot.slane %v1266, 4
        %v1272 = vsel %vm512, %v1271, %v1254
        %v1273 = vrot.slane %v1254, 4
        %v1274 = vsel %vm512, %v1266, %v1273
        %1276 = vrot.lane.b32.xlu0 %v1270, 8
        %v1277 = vpop.permute.xlu0 %1276
        %1280 = vrot.lane.b32.xlu0 %v1272, 16
        %v1281 = vpop.permute.xlu0 %1280
        %1284 = vrot.lane.b32.xlu0 %v1274, 24
        %v1285 = vpop.permute.xlu0 %1284
        %v1287 = vsel %vm872, %v1268, %v1277
        %vm1288 = vcmask 130048
        %v1289 = vsel %vm1288, %v1287, %v1281
        %vm1290 = vcmask 195584
        %v1291 = vsel %vm1290, %v1289, %v1285
        %v1292 = vld [vmem:[#allocation11] sm:$0xff]
        %v1293 = vld [vmem:[#allocation11 + $0x8] sm:$0xff]
        %v1294 = vld [vmem:[#allocation11 + $0x10] sm:$0xff]
        %v1295 = vld [vmem:[#allocation11 + $0x18] sm:$0xff]
        %v1296 = vld [vmem:[%s6] sm:$0x1]
        %v1298 = vperm.slane %v1296, 0
        %v1301 = vsel %vm425, %v1291, 0
        %1303 = vmatpush.msra.mxu0 0.0
        %1304 = vmatpush.msra.mxu0 0.0
        %1305 = vmatpush.msra.mxu0 0.0
        %1306 = vmatpush.msra.mxu0 0.0
        %1307 = vmatpush.msra.mxu0 0.0
        %1308 = vmatpush.msra.mxu0 0.0
        %1309 = vmatpush.msra.mxu0 0.0
        %1310 = vmatpush.msra.mxu0 0.0
        %1311 = vmatpush.msra.mxu0 0.0
        %1312 = vmatpush.msra.mxu0 0.0
        %1313 = vmatpush.msra.mxu0 0.0
        %1314 = vmatpush.msra.mxu0 0.0
        %1315 = vmatpush.msra.mxu0 %v1295
        %1316 = vmatpush.msra.mxu0 %v1294
        %1317 = vmatpush.msra.mxu0 %v1293
        %1318 = vmatpush.msra.mxu0 %v1292
        %1319 = vmatmul.f32.gmra.mxu0 %v1301
        %v1320 = vpop.f32.mrf.mxu0
        %v1321 = vadd.f32 %v1298, %v1320
        %1322 = vdwg.mxu0
        %1323 = vst.msk [vmem:[%s417] sm:$0xff] %vm425, %v1321
        %s1324 = sand.u32 %s210, 1
        %s1325 = scalar_lea.sflag [#allocation4], %s1324
        %s1326 = sand.u32 %s210, 1
        %s1327 = smul.addr %s1326, 8
        %s1328 = scalar_lea.vmem [#allocation13], %s1327
        // Predicated region
        $region73: #{tpu_custom_call.1} parent=47 // pred_check
          %p1329 = pneg %p220
        $region74: #{tpu_custom_call.1} parent=47 // pred_check_branch
          %1331 = sbr.rel (%p1329) target = $region76
        $region75: #{tpu_custom_call.1} parent=47 // pred_region
          %1333 = vsyncadd %s1325, 0
          %s1334 = sadd.s32 %s34, %s33
          %s1335 = smul.addr %s1334, 8
          %s1336 = scalar_lea.hbm %s7, %s1335
          %s1338 = sshll.u32 %s1328, 4
          %s1339 = int_to_ptr.vmem [resolvable:$true] %s1338
          %s1340 = sshll.u32 %s1336, 4
          %s1341 = int_to_ptr.hbm [resolvable:$true] %s1340
          %1343 = dma.vmem_to_hbm [thread:$0]  %s1339, 128, %s1341, %s1325
        $region76: #{tpu_custom_call.1} parent=47 // pred_fallthru
          _
      $region48: #{tpu_custom_call.1} parent=5 // pred_fallthru
        _
      %p1344 = scmp.le.s32.totalorder 2, %s24
      // Predicated region
      $region77: #{tpu_custom_call.1} parent=5 // pred_check
        %p1345 = pneg %p1344
      $region78: #{tpu_custom_call.1} parent=5 // pred_check_branch
        %1347 = sbr.rel (%p1345) target = $region80
      $region79: #{tpu_custom_call.1} parent=5 // pred_region
        %s1348 = ssub.s32 %s24, 2
        // Predicated region
        $region81: #{tpu_custom_call.1} parent=79 // pred_check
          %p1349 = pneg %p226
        $region82: #{tpu_custom_call.1} parent=79 // pred_check_branch
          %1351 = sbr.rel (%p1349) target = $region84
        $region83: #{tpu_custom_call.1} parent=79 // pred_region
          %s1352 = sand.u32 %s211, 1
          %s1353 = scalar_lea.sflag [#allocation4], %s1352
          %s1354 = sand.u32 %s211, 1
          %s1355 = smul.addr %s1354, 8
          %s1356 = scalar_lea.vmem [#allocation13], %s1355
          %1358 = dma.done %s1353, 128
        $region84: #{tpu_custom_call.1} parent=79 // pred_fallthru
          _
      $region80: #{tpu_custom_call.1} parent=5 // pred_fallthru
        _
    $region6: #{tpu_custom_call.1} parent=1 // loop_footer
      %s28 = sadd.s32 1, %s24
    $region7: #{tpu_custom_call.1} parent=1 // loop_footer_branch
      %23 = sbr.rel target = $region3
    $region8: #{tpu_custom_call.1} parent=1 // loop_exit
      _
    %1359 = vsyncpa [#allocation3], 1
    %s1360 = scalar_lea.sflag [#allocation3], 1
    %1361 = vsyncpa %s1360, 1
    %1362 = vsyncpa [#allocation6], 1
    %s1363 = scalar_lea.sflag [#allocation6], 1
    %1364 = vsyncpa %s1363, 1
    %1365 = vsyncpa [#allocation9], 1
    %1366 = vsyncpa [#allocation12], 1
    %1367 = vsyncpa [#allocation4], 1
    %s1368 = scalar_lea.sflag [#allocation4], 1
    %1369 = vsyncpa %s1368, 1

</llo_original>
